<compile_context>
chip_gen: v7x
topology: tpu7x:2x2x1
jax: 0.10.0
libtpu: 0.0.40
codegen_flags: <defaults>
</compile_context>

<pallas_src>
import jax
import jax.numpy as jnp
from jax.experimental import pallas as pl
from jax.experimental.pallas import tpu as pltpu

EPS = 1e-5


# ---------------------------------------------------------------------------
# Fused BasicBlock kernel
# ---------------------------------------------------------------------------
def _basic_block_kernel(x_ref, wf1_ref, wf2_ref, g1_ref, b1_ref,
                        g2_ref, b2_ref, ssum_ref, sbc_ref,
                        out_ref, st_ref):
    """x_ref: (N, H, W*C) f32.  st_ref: (N, H, 3*W*C) bf16 dy-folded staging."""
    N, H, WC = x_ref.shape
    C = g1_ref.shape[-1]
    W = WC // C
    R = N * H
    M = R * W                                   # elements per channel (BN)
    inv_m = 1.0 / float(M)

    s_sum = ssum_ref[...]                       # (W*C, C) lane -> channel fold
    s_bcast = sbc_ref[...]                      # (C, W*C) channel -> lane bcast
    zrow = jnp.zeros((N, 1, WC), jnp.bfloat16)

    def fill_staging(a_bf16):
        """Write the three H-shifted dy bands of `a` into the bf16 slab."""
        st_ref[:, :, WC:2 * WC] = a_bf16                          # dy=1: row r
        st_ref[:, 1:H, 0:WC] = a_bf16[:, 0:H - 1, :]              # dy=0: row r-1
        st_ref[:, 0:1, 0:WC] = zrow                               # top halo
        st_ref[:, 0:H - 1, 2 * WC:3 * WC] = a_bf16[:, 1:H, :]     # dy=2: row r+1
        st_ref[:, H - 1:H, 2 * WC:3 * WC] = zrow                  # bottom halo

    def conv(wf_ref):
        """Single MXU matmul: (R, 3*W*Cin) @ (3*W*Cin, W*Cout) -> f32."""
        st = st_ref[...].reshape(R, 3 * WC)
        return jnp.dot(st, wf_ref[...], preferred_element_type=jnp.float32)

    def bn_train(y, gamma, beta):
        """Training-mode BatchNorm2d on the lane-dense (R, W*C) slab.

        One-pass statistics: sublane reduce of y and y*y, then per-channel
        fold / broadcast across the (w, c) lane interleave via tiny 0/1 MXU
        matmuls.  All statistics in f32.
        """
        sum_c = jnp.dot(jnp.sum(y, axis=0, keepdims=True), s_sum,
                        preferred_element_type=jnp.float32)           # (1, C)
        sq_c = jnp.dot(jnp.sum(y * y, axis=0, keepdims=True), s_sum,
                       preferred_element_type=jnp.float32)            # (1, C)
        mean_c = sum_c * inv_m
        var_c = jnp.maximum(sq_c * inv_m - mean_c * mean_c, 0.0)      # biased
        scale_c = gamma * jax.lax.rsqrt(var_c + EPS)
        shift_c = beta - mean_c * scale_c
        scale_f = jnp.dot(scale_c, s_bcast, preferred_element_type=jnp.float32)
        shift_f = jnp.dot(shift_c, s_bcast, preferred_element_type=jnp.float32)
        return y * scale_f + shift_f

    # ---- stage 1: conv1 -> bn1 -> relu -------------------------------------
    fill_staging(x_ref[...].astype(jnp.bfloat16))
    h = jnp.maximum(bn_train(conv(wf1_ref), g1_ref[...], b1_ref[...]), 0.0)

    # ---- stage 2: conv2 -> bn2 -> +identity -> relu ------------------------
    fill_staging(h.reshape(N, H, WC).astype(jnp.bfloat16))
    y = bn_train(conv(wf2_ref), g2_ref[...], b2_ref[...])
    y = y + x_ref[...].reshape(R, WC)        # identity re-read (stride=1)
    out_ref[...] = jnp.maximum(y, 0.0).astype(out_ref.dtype)   # lane-dense store


# ---------------------------------------------------------------------------
# Wrapper-side weight preparation
# ---------------------------------------------------------------------------
def _make_banded_weights(w, W):
    """(3,3,Cin,Cout) conv weights -> (3, W*Cin, W*Cout) block-banded matrices.

    band[dy, wp*Cin + ci, wo*Cout + co] = w[dy, wp - wo + 1, ci, co] for
    |wp - wo| <= 1, zero otherwise — i.e. the dx taps and the W-axis zero
    padding are folded into one matmul per kernel row dy.
    """
    KH, KW, Cin, Cout = w.shape
    blk = w.reshape(KH, KW * Cin, Cout)        # rows ordered (dx, ci)
    band = jnp.zeros((KH, W * Cin, W * Cout), w.dtype)
    for wo in range(W):
        r0 = (wo - 1) * Cin                    # row of the dx=0 tap
        lo = max(r0, 0)
        hi = min(r0 + 3 * Cin, W * Cin)        # clipping == zero padding in W
        band = band.at[:, lo:hi, wo * Cout:(wo + 1) * Cout].set(
            blk[:, lo - r0:hi - r0, :])
    return band


def _fold_dy(band):
    """(3, W*Cin, W*Cout) -> (3*W*Cin, W*Cout): rows ordered (dy, wp, ci)."""
    KH, K, Nc = band.shape
    return band.reshape(KH * K, Nc)


def _vmem_cap_bytes():
    """~85% of this generation's physical VMEM per TensorCore."""
    try:
        cap = int(pltpu.get_tpu_info().vmem_capacity_bytes)
    except Exception:
        cap = 128 * 1024 * 1024                # v5e/v6e fallback
    return int(0.85 * cap)


def basic_block_forward(x_nhwc, params):
    """Fused BasicBlock forward.  x_nhwc: (N, H, W, C) float32."""
    w1, g1, b1, w2, g2, b2 = params
    N, H, W, Cin = x_nhwc.shape
    Cout = w1.shape[-1]
    if Cin != Cout:
        # TODO(synk): stride>1 / downsample shortcut is not implemented.
        raise NotImplementedError("identity shortcut needs Cin == Cout")

    # One-off (tiny) weight / constant preparation outside the kernel.
    wf1 = _fold_dy(_make_banded_weights(w1, W)).astype(jnp.bfloat16)  # (3WC, WC)
    wf2 = _fold_dy(_make_banded_weights(w2, W)).astype(jnp.bfloat16)
    ch = jnp.tile(jnp.arange(Cout, dtype=jnp.int32), W)               # lane -> ch
    s_sum = (ch[:, None] == jnp.arange(Cout, dtype=jnp.int32)[None, :]
             ).astype(jnp.float32)                                    # (W*C, C)
    s_bcast = s_sum.T                                                 # (C, W*C)
    g1 = jnp.asarray(g1, jnp.float32).reshape(1, Cout)
    b1 = jnp.asarray(b1, jnp.float32).reshape(1, Cout)
    g2 = jnp.asarray(g2, jnp.float32).reshape(1, Cout)
    b2 = jnp.asarray(b2, jnp.float32).reshape(1, Cout)
    x2d = x_nhwc.reshape(N, H, W * Cin)                               # lane-dense

    inputs = (x2d, wf1, wf2, g1, b1, g2, b2, s_sum, s_bcast)
    out2d_shape = (N * H, W * Cout)

    # Actual MXU work of the dy-folded banded form (two convs).
    flops = 2 * (2 * (N * H) * (3 * W * Cin) * (W * Cout))
    in_bytes = sum(int(a.size) * a.dtype.itemsize for a in inputs)
    out_bytes = N * H * W * Cout * 4
    cost = pl.CostEstimate(flops=flops, transcendentals=2 * Cout,
                           bytes_accessed=in_bytes + out_bytes)

    scratch_bytes = 2 * N * H * 3 * W * Cin                # bf16 staging slab
    vmem_need = 2 * (in_bytes + out_bytes) + scratch_bytes
    compiler_kwargs = dict(dimension_semantics=("arbitrary",))
    if vmem_need > 12 * 1024 * 1024:
        # Raise the scoped limit, but never past ~85% of physical VMEM for
        # this generation (v7x: 64 MiB/TC).  Exceeding that is the signal to
        # tile (see the two-pass BatchNorm TODO), not to raise the limit.
        compiler_kwargs["vmem_limit_bytes"] = min(int(1.3 * vmem_need),
                                                  _vmem_cap_bytes())

    out2d = pl.pallas_call(
        _basic_block_kernel,
        out_shape=jax.ShapeDtypeStruct(out2d_shape, x_nhwc.dtype),
        grid=(1,),
        in_specs=[pl.BlockSpec(a.shape, lambda i, nd=a.ndim: (0,) * nd)
                  for a in inputs],
        out_specs=pl.BlockSpec(out2d_shape, lambda i: (0, 0)),
        scratch_shapes=[
            pltpu.VMEM((N, H, 3 * W * Cin), jnp.bfloat16),   # dy-folded staging
        ],
        compiler_params=pltpu.CompilerParams(**compiler_kwargs),
        cost_estimate=cost,
    )(*inputs)
    return out2d.reshape(N, H, W, Cout)


# ---------------------------------------------------------------------------
# Pure-JAX reference (mirrors the kernel's bf16 matmul inputs, f32 accumulate)
# ---------------------------------------------------------------------------
def _reference_forward(x_nhwc, params):
    w1, g1, b1, w2, g2, b2 = params

    def conv(a, w):
        a = a.astype(jnp.bfloat16).astype(jnp.float32)
        w = w.astype(jnp.bfloat16).astype(jnp.float32)
        return jax.lax.conv_general_dilated(
            a, w, window_strides=(1, 1), padding="SAME",
            dimension_numbers=("NHWC", "HWIO", "NHWC"))

    def bn(a, g, b):
        m = jnp.mean(a, axis=(0, 1, 2))
        v = jnp.mean(jnp.square(a - m), axis=(0, 1, 2))
        return (a - m) * jax.lax.rsqrt(v + EPS) * g.reshape(-1) + b.reshape(-1)

    h = jax.nn.relu(bn(conv(x_nhwc, w1), g1, b1))
    y = bn(conv(h, w2), g2, b2) + x_nhwc
    return jax.nn.relu(y)


def init_params(key, in_channels, out_channels):
    k1, k2, k3, k4 = jax.random.split(key, 4)
    # Synthetic weights in PyTorch layout, transposed to (KH, KW, Cin, Cout).
    w1 = jax.random.normal(k1, (out_channels, in_channels, 3, 3), jnp.float32) * 0.1
    w2 = jax.random.normal(k2, (out_channels, out_channels, 3, 3), jnp.float32) * 0.1
    w1 = jnp.transpose(w1, (2, 3, 1, 0))
    w2 = jnp.transpose(w2, (2, 3, 1, 0))
    g1 = 1.0 + 0.1 * jax.random.normal(k3, (1, out_channels), jnp.float32)
    b1 = jnp.zeros((1, out_channels), jnp.float32)
    g2 = 1.0 + 0.1 * jax.random.normal(k4, (1, out_channels), jnp.float32)
    b2 = jnp.zeros((1, out_channels), jnp.float32)
    return (w1, g1, b1, w2, g2, b2)


if __name__ == "__main__":
    key = jax.random.PRNGKey(0)
    kx, kp = jax.random.split(key)

    N, C, H, W = 2, 8, 16, 16          # in_ch == out_ch, stride=1; W*C = 128
    x_nchw = jax.random.normal(kx, (N, C, H, W), jnp.float32)   # PyTorch layout
    x_nhwc = jnp.transpose(x_nchw, (0, 2, 3, 1))                # kernel layout

    params = init_params(kp, in_channels=C, out_channels=C)

    fwd = jax.jit(basic_block_forward)
    out = jax.block_until_ready(fwd(x_nhwc, params))

    assert out.shape == (N, H, W, C)
    assert bool(jnp.all(jnp.isfinite(out)))
    assert bool(jnp.all(out >= 0.0))                            # final ReLU

    ref = _reference_forward(x_nhwc, params)
    max_err = float(jnp.max(jnp.abs(out - ref)))
    assert max_err < 5e-2, f"kernel vs reference mismatch: {max_err}"

    print("KERNEL_OK")
</pallas_src>

<mosaic_0001>
module attributes {stable_mosaic.version = 11 : i64} {
  func.func @_basic_block_kernel(%arg0: i32, %arg1: memref<2x16x128xf32, #tpu.memory_space<vmem>>, %arg2: memref<384x128xbf16, #tpu.memory_space<vmem>>, %arg3: memref<384x128xbf16, #tpu.memory_space<vmem>>, %arg4: memref<1x8xf32, #tpu.memory_space<vmem>>, %arg5: memref<1x8xf32, #tpu.memory_space<vmem>>, %arg6: memref<1x8xf32, #tpu.memory_space<vmem>>, %arg7: memref<1x8xf32, #tpu.memory_space<vmem>>, %arg8: memref<128x8xf32, #tpu.memory_space<vmem>>, %arg9: memref<8x128xf32, #tpu.memory_space<vmem>>, %arg10: memref<32x128xf32, #tpu.memory_space<vmem>>, %arg11: memref<2x16x384xbf16, #tpu.memory_space<vmem>>) attributes {dimension_semantics = [#tpu.dimension_semantics<arbitrary>], iteration_bounds = array<i64: 1>, scalar_prefetch = 0 : i64, scratch_operands = 1 : i64, tpu.core_type = #tpu.core_type<tc>, window_params = [{pipeline_mode = #tpu.pipeline_mode<synchronous>, transform_indices = @transform_0, window_bounds = array<i64: 2, 16, 128>}, {pipeline_mode = #tpu.pipeline_mode<synchronous>, transform_indices = @transform_1, window_bounds = array<i64: 384, 128>}, {pipeline_mode = #tpu.pipeline_mode<synchronous>, transform_indices = @transform_2, window_bounds = array<i64: 384, 128>}, {pipeline_mode = #tpu.pipeline_mode<synchronous>, transform_indices = @transform_3, window_bounds = array<i64: 1, 8>}, {pipeline_mode = #tpu.pipeline_mode<synchronous>, transform_indices = @transform_4, window_bounds = array<i64: 1, 8>}, {pipeline_mode = #tpu.pipeline_mode<synchronous>, transform_indices = @transform_5, window_bounds = array<i64: 1, 8>}, {pipeline_mode = #tpu.pipeline_mode<synchronous>, transform_indices = @transform_6, window_bounds = array<i64: 1, 8>}, {pipeline_mode = #tpu.pipeline_mode<synchronous>, transform_indices = @transform_7, window_bounds = array<i64: 128, 8>}, {pipeline_mode = #tpu.pipeline_mode<synchronous>, transform_indices = @transform_8, window_bounds = array<i64: 8, 128>}, {pipeline_mode = #tpu.pipeline_mode<synchronous>, transform_indices = @transform_9, window_bounds = array<i64: 32, 128>}]} {
    %c0 = arith.constant 0 : index
    %c0_0 = arith.constant 0 : index
    %0 = vector.load %arg8[%c0, %c0_0] : memref<128x8xf32, #tpu.memory_space<vmem>>, vector<128x8xf32>
    %c0_1 = arith.constant 0 : index
    %c0_2 = arith.constant 0 : index
    %1 = vector.load %arg9[%c0_1, %c0_2] : memref<8x128xf32, #tpu.memory_space<vmem>>, vector<8x128xf32>
    %cst = arith.constant 0.000000e+00 : bf16
    %2 = vector.broadcast %cst : bf16 to vector<2x1x128xbf16>
    %c0_3 = arith.constant 0 : index
    %c0_4 = arith.constant 0 : index
    %c0_5 = arith.constant 0 : index
    %3 = vector.load %arg1[%c0_3, %c0_4, %c0_5] : memref<2x16x128xf32, #tpu.memory_space<vmem>>, vector<2x16x128xf32>
    %4 = arith.truncf %3 : vector<2x16x128xf32> to vector<2x16x128xbf16>
    %c0_6 = arith.constant 0 : index
    %c0_7 = arith.constant 0 : index
    %c128 = arith.constant 128 : index
    %5 = vector.load %arg11[%c0_6, %c0_7, %c128] : memref<2x16x384xbf16, #tpu.memory_space<vmem>>, vector<2x16x128xbf16>
    tpu.vector_store %arg11[%c0_6, %c0_7, %c128], %4 {strides = array<i32>} : memref<2x16x384xbf16, #tpu.memory_space<vmem>>, vector<2x16x128xbf16>,
    %6 = vector.extract_strided_slice %4 {offsets = [0, 0, 0], sizes = [2, 15, 128], strides = [1, 1, 1]} : vector<2x16x128xbf16> to vector<2x15x128xbf16>
    %c0_8 = arith.constant 0 : index
    %c1 = arith.constant 1 : index
    %c0_9 = arith.constant 0 : index
    %7 = vector.load %arg11[%c0_8, %c1, %c0_9] : memref<2x16x384xbf16, #tpu.memory_space<vmem>>, vector<2x15x128xbf16>
    tpu.vector_store %arg11[%c0_8, %c1, %c0_9], %6 {strides = array<i32>} : memref<2x16x384xbf16, #tpu.memory_space<vmem>>, vector<2x15x128xbf16>,
    %c0_10 = arith.constant 0 : index
    %c0_11 = arith.constant 0 : index
    %c0_12 = arith.constant 0 : index
    %8 = vector.load %arg11[%c0_10, %c0_11, %c0_12] : memref<2x16x384xbf16, #tpu.memory_space<vmem>>, vector<2x1x128xbf16>
    tpu.vector_store %arg11[%c0_10, %c0_11, %c0_12], %2 {strides = array<i32>} : memref<2x16x384xbf16, #tpu.memory_space<vmem>>, vector<2x1x128xbf16>,
    %9 = vector.extract_strided_slice %4 {offsets = [0, 1, 0], sizes = [2, 15, 128], strides = [1, 1, 1]} : vector<2x16x128xbf16> to vector<2x15x128xbf16>
    %c0_13 = arith.constant 0 : index
    %c0_14 = arith.constant 0 : index
    %c256 = arith.constant 256 : index
    %10 = vector.load %arg11[%c0_13, %c0_14, %c256] : memref<2x16x384xbf16, #tpu.memory_space<vmem>>, vector<2x15x128xbf16>
    tpu.vector_store %arg11[%c0_13, %c0_14, %c256], %9 {strides = array<i32>} : memref<2x16x384xbf16, #tpu.memory_space<vmem>>, vector<2x15x128xbf16>,
    %c0_15 = arith.constant 0 : index
    %c15 = arith.constant 15 : index
    %c256_16 = arith.constant 256 : index
    %11 = vector.load %arg11[%c0_15, %c15, %c256_16] : memref<2x16x384xbf16, #tpu.memory_space<vmem>>, vector<2x1x128xbf16>
    tpu.vector_store %arg11[%c0_15, %c15, %c256_16], %2 {strides = array<i32>} : memref<2x16x384xbf16, #tpu.memory_space<vmem>>, vector<2x1x128xbf16>,
    %c0_17 = arith.constant 0 : index
    %c0_18 = arith.constant 0 : index
    %c0_19 = arith.constant 0 : index
    %12 = vector.load %arg11[%c0_17, %c0_18, %c0_19] : memref<2x16x384xbf16, #tpu.memory_space<vmem>>, vector<2x16x384xbf16>
    %13 = vector.shape_cast %12 : vector<2x16x384xbf16> to vector<32x384xbf16>
    %c0_20 = arith.constant 0 : index
    %c0_21 = arith.constant 0 : index
    %14 = vector.load %arg2[%c0_20, %c0_21] : memref<384x128xbf16, #tpu.memory_space<vmem>>, vector<384x128xbf16>
    %cst_22 = arith.constant dense<0.000000e+00> : vector<32x128xf32>
    %15 = tpu.matmul %13, %14, %cst_22 {dimension_numbers = #tpu.dot_dimension_numbers<[1], [0], [0], [1], [0, 0, 1, 1], [], []>} : vector<32x384xbf16>, vector<384x128xbf16>, vector<32x128xf32> -> vector<32x128xf32>
    %c0_23 = arith.constant 0 : index
    %c0_24 = arith.constant 0 : index
    %16 = vector.load %arg4[%c0_23, %c0_24] : memref<1x8xf32, #tpu.memory_space<vmem>>, vector<1x8xf32>
    %c0_25 = arith.constant 0 : index
    %c0_26 = arith.constant 0 : index
    %17 = vector.load %arg5[%c0_25, %c0_26] : memref<1x8xf32, #tpu.memory_space<vmem>>, vector<1x8xf32>
    %cst_27 = arith.constant dense<0.000000e+00> : vector<128xf32>
    %18 = vector.multi_reduction <add>, %15, %cst_27 [0] : vector<32x128xf32> to vector<128xf32>
    %19 = vector.shape_cast %18 : vector<128xf32> to vector<1x128xf32>
    %cst_28 = arith.constant dense<0.000000e+00> : vector<1x8xf32>
    %20 = tpu.matmul %19, %0, %cst_28 {dimension_numbers = #tpu.dot_dimension_numbers<[1], [0], [0], [1], [0, 0, 1, 1], [], []>} : vector<1x128xf32>, vector<128x8xf32>, vector<1x8xf32> -> vector<1x8xf32>
    %21 = arith.mulf %15, %15 : vector<32x128xf32>
    %cst_29 = arith.constant dense<0.000000e+00> : vector<128xf32>
    %22 = vector.multi_reduction <add>, %21, %cst_29 [0] : vector<32x128xf32> to vector<128xf32>
    %23 = vector.shape_cast %22 : vector<128xf32> to vector<1x128xf32>
    %cst_30 = arith.constant dense<0.000000e+00> : vector<1x8xf32>
    %24 = tpu.matmul %23, %0, %cst_30 {dimension_numbers = #tpu.dot_dimension_numbers<[1], [0], [0], [1], [0, 0, 1, 1], [], []>} : vector<1x128xf32>, vector<128x8xf32>, vector<1x8xf32> -> vector<1x8xf32>
    %cst_31 = arith.constant 0.001953125 : f32
    %25 = vector.broadcast %cst_31 : f32 to vector<1x8xf32>
    %26 = arith.mulf %20, %25 : vector<1x8xf32>
    %cst_32 = arith.constant 0.001953125 : f32
    %27 = vector.broadcast %cst_32 : f32 to vector<1x8xf32>
    %28 = arith.mulf %24, %27 : vector<1x8xf32>
    %29 = arith.mulf %26, %26 : vector<1x8xf32>
    %30 = arith.subf %28, %29 : vector<1x8xf32>
    %cst_33 = arith.constant 0.000000e+00 : f32
    %31 = vector.broadcast %cst_33 : f32 to vector<1x8xf32>
    %32 = arith.maximumf %30, %31 : vector<1x8xf32>
    %cst_34 = arith.constant 9.99999974E-6 : f32
    %33 = vector.broadcast %cst_34 : f32 to vector<1x8xf32>
    %34 = arith.addf %32, %33 : vector<1x8xf32>
    %35 = math.rsqrt %34 : vector<1x8xf32>
    %36 = arith.mulf %16, %35 : vector<1x8xf32>
    %37 = arith.mulf %26, %36 : vector<1x8xf32>
    %38 = arith.subf %17, %37 : vector<1x8xf32>
    %cst_35 = arith.constant dense<0.000000e+00> : vector<1x128xf32>
    %39 = tpu.matmul %36, %1, %cst_35 {dimension_numbers = #tpu.dot_dimension_numbers<[1], [0], [0], [1], [0, 0, 1, 1], [], []>} : vector<1x8xf32>, vector<8x128xf32>, vector<1x128xf32> -> vector<1x128xf32>
    %cst_36 = arith.constant dense<0.000000e+00> : vector<1x128xf32>
    %40 = tpu.matmul %38, %1, %cst_36 {dimension_numbers = #tpu.dot_dimension_numbers<[1], [0], [0], [1], [0, 0, 1, 1], [], []>} : vector<1x8xf32>, vector<8x128xf32>, vector<1x128xf32> -> vector<1x128xf32>
    %41 = vector.broadcast %39 : vector<1x128xf32> to vector<32x128xf32>
    %42 = arith.mulf %15, %41 : vector<32x128xf32>
    %43 = vector.broadcast %40 : vector<1x128xf32> to vector<32x128xf32>
    %44 = arith.addf %42, %43 : vector<32x128xf32>
    %cst_37 = arith.constant 0.000000e+00 : f32
    %45 = vector.broadcast %cst_37 : f32 to vector<32x128xf32>
    %46 = arith.maximumf %44, %45 : vector<32x128xf32>
    %47 = vector.shape_cast %46 : vector<32x128xf32> to vector<2x16x128xf32>
    %48 = arith.truncf %47 : vector<2x16x128xf32> to vector<2x16x128xbf16>
    %c0_38 = arith.constant 0 : index
    %c0_39 = arith.constant 0 : index
    %c128_40 = arith.constant 128 : index
    %49 = vector.load %arg11[%c0_38, %c0_39, %c128_40] : memref<2x16x384xbf16, #tpu.memory_space<vmem>>, vector<2x16x128xbf16>
    tpu.vector_store %arg11[%c0_38, %c0_39, %c128_40], %48 {strides = array<i32>} : memref<2x16x384xbf16, #tpu.memory_space<vmem>>, vector<2x16x128xbf16>,
    %50 = vector.extract_strided_slice %48 {offsets = [0, 0, 0], sizes = [2, 15, 128], strides = [1, 1, 1]} : vector<2x16x128xbf16> to vector<2x15x128xbf16>
    %c0_41 = arith.constant 0 : index
    %c1_42 = arith.constant 1 : index
    %c0_43 = arith.constant 0 : index
    %51 = vector.load %arg11[%c0_41, %c1_42, %c0_43] : memref<2x16x384xbf16, #tpu.memory_space<vmem>>, vector<2x15x128xbf16>
    tpu.vector_store %arg11[%c0_41, %c1_42, %c0_43], %50 {strides = array<i32>} : memref<2x16x384xbf16, #tpu.memory_space<vmem>>, vector<2x15x128xbf16>,
    %c0_44 = arith.constant 0 : index
    %c0_45 = arith.constant 0 : index
    %c0_46 = arith.constant 0 : index
    %52 = vector.load %arg11[%c0_44, %c0_45, %c0_46] : memref<2x16x384xbf16, #tpu.memory_space<vmem>>, vector<2x1x128xbf16>
    tpu.vector_store %arg11[%c0_44, %c0_45, %c0_46], %2 {strides = array<i32>} : memref<2x16x384xbf16, #tpu.memory_space<vmem>>, vector<2x1x128xbf16>,
    %53 = vector.extract_strided_slice %48 {offsets = [0, 1, 0], sizes = [2, 15, 128], strides = [1, 1, 1]} : vector<2x16x128xbf16> to vector<2x15x128xbf16>
    %c0_47 = arith.constant 0 : index
    %c0_48 = arith.constant 0 : index
    %c256_49 = arith.constant 256 : index
    %54 = vector.load %arg11[%c0_47, %c0_48, %c256_49] : memref<2x16x384xbf16, #tpu.memory_space<vmem>>, vector<2x15x128xbf16>
    tpu.vector_store %arg11[%c0_47, %c0_48, %c256_49], %53 {strides = array<i32>} : memref<2x16x384xbf16, #tpu.memory_space<vmem>>, vector<2x15x128xbf16>,
    %c0_50 = arith.constant 0 : index
    %c15_51 = arith.constant 15 : index
    %c256_52 = arith.constant 256 : index
    %55 = vector.load %arg11[%c0_50, %c15_51, %c256_52] : memref<2x16x384xbf16, #tpu.memory_space<vmem>>, vector<2x1x128xbf16>
    tpu.vector_store %arg11[%c0_50, %c15_51, %c256_52], %2 {strides = array<i32>} : memref<2x16x384xbf16, #tpu.memory_space<vmem>>, vector<2x1x128xbf16>,
    %c0_53 = arith.constant 0 : index
    %c0_54 = arith.constant 0 : index
    %c0_55 = arith.constant 0 : index
    %56 = vector.load %arg11[%c0_53, %c0_54, %c0_55] : memref<2x16x384xbf16, #tpu.memory_space<vmem>>, vector<2x16x384xbf16>
    %57 = vector.shape_cast %56 : vector<2x16x384xbf16> to vector<32x384xbf16>
    %c0_56 = arith.constant 0 : index
    %c0_57 = arith.constant 0 : index
    %58 = vector.load %arg3[%c0_56, %c0_57] : memref<384x128xbf16, #tpu.memory_space<vmem>>, vector<384x128xbf16>
    %cst_58 = arith.constant dense<0.000000e+00> : vector<32x128xf32>
    %59 = tpu.matmul %57, %58, %cst_58 {dimension_numbers = #tpu.dot_dimension_numbers<[1], [0], [0], [1], [0, 0, 1, 1], [], []>} : vector<32x384xbf16>, vector<384x128xbf16>, vector<32x128xf32> -> vector<32x128xf32>
    %c0_59 = arith.constant 0 : index
    %c0_60 = arith.constant 0 : index
    %60 = vector.load %arg6[%c0_59, %c0_60] : memref<1x8xf32, #tpu.memory_space<vmem>>, vector<1x8xf32>
    %c0_61 = arith.constant 0 : index
    %c0_62 = arith.constant 0 : index
    %61 = vector.load %arg7[%c0_61, %c0_62] : memref<1x8xf32, #tpu.memory_space<vmem>>, vector<1x8xf32>
    %cst_63 = arith.constant dense<0.000000e+00> : vector<128xf32>
    %62 = vector.multi_reduction <add>, %59, %cst_63 [0] : vector<32x128xf32> to vector<128xf32>
    %63 = vector.shape_cast %62 : vector<128xf32> to vector<1x128xf32>
    %cst_64 = arith.constant dense<0.000000e+00> : vector<1x8xf32>
    %64 = tpu.matmul %63, %0, %cst_64 {dimension_numbers = #tpu.dot_dimension_numbers<[1], [0], [0], [1], [0, 0, 1, 1], [], []>} : vector<1x128xf32>, vector<128x8xf32>, vector<1x8xf32> -> vector<1x8xf32>
    %65 = arith.mulf %59, %59 : vector<32x128xf32>
    %cst_65 = arith.constant dense<0.000000e+00> : vector<128xf32>
    %66 = vector.multi_reduction <add>, %65, %cst_65 [0] : vector<32x128xf32> to vector<128xf32>
    %67 = vector.shape_cast %66 : vector<128xf32> to vector<1x128xf32>
    %cst_66 = arith.constant dense<0.000000e+00> : vector<1x8xf32>
    %68 = tpu.matmul %67, %0, %cst_66 {dimension_numbers = #tpu.dot_dimension_numbers<[1], [0], [0], [1], [0, 0, 1, 1], [], []>} : vector<1x128xf32>, vector<128x8xf32>, vector<1x8xf32> -> vector<1x8xf32>
    %cst_67 = arith.constant 0.001953125 : f32
    %69 = vector.broadcast %cst_67 : f32 to vector<1x8xf32>
    %70 = arith.mulf %64, %69 : vector<1x8xf32>
    %cst_68 = arith.constant 0.001953125 : f32
    %71 = vector.broadcast %cst_68 : f32 to vector<1x8xf32>
    %72 = arith.mulf %68, %71 : vector<1x8xf32>
    %73 = arith.mulf %70, %70 : vector<1x8xf32>
    %74 = arith.subf %72, %73 : vector<1x8xf32>
    %cst_69 = arith.constant 0.000000e+00 : f32
    %75 = vector.broadcast %cst_69 : f32 to vector<1x8xf32>
    %76 = arith.maximumf %74, %75 : vector<1x8xf32>
    %cst_70 = arith.constant 9.99999974E-6 : f32
    %77 = vector.broadcast %cst_70 : f32 to vector<1x8xf32>
    %78 = arith.addf %76, %77 : vector<1x8xf32>
    %79 = math.rsqrt %78 : vector<1x8xf32>
    %80 = arith.mulf %60, %79 : vector<1x8xf32>
    %81 = arith.mulf %70, %80 : vector<1x8xf32>
    %82 = arith.subf %61, %81 : vector<1x8xf32>
    %cst_71 = arith.constant dense<0.000000e+00> : vector<1x128xf32>
    %83 = tpu.matmul %80, %1, %cst_71 {dimension_numbers = #tpu.dot_dimension_numbers<[1], [0], [0], [1], [0, 0, 1, 1], [], []>} : vector<1x8xf32>, vector<8x128xf32>, vector<1x128xf32> -> vector<1x128xf32>
    %cst_72 = arith.constant dense<0.000000e+00> : vector<1x128xf32>
    %84 = tpu.matmul %82, %1, %cst_72 {dimension_numbers = #tpu.dot_dimension_numbers<[1], [0], [0], [1], [0, 0, 1, 1], [], []>} : vector<1x8xf32>, vector<8x128xf32>, vector<1x128xf32> -> vector<1x128xf32>
    %85 = vector.broadcast %83 : vector<1x128xf32> to vector<32x128xf32>
    %86 = arith.mulf %59, %85 : vector<32x128xf32>
    %87 = vector.broadcast %84 : vector<1x128xf32> to vector<32x128xf32>
    %88 = arith.addf %86, %87 : vector<32x128xf32>
    %c0_73 = arith.constant 0 : index
    %c0_74 = arith.constant 0 : index
    %c0_75 = arith.constant 0 : index
    %89 = vector.load %arg1[%c0_73, %c0_74, %c0_75] : memref<2x16x128xf32, #tpu.memory_space<vmem>>, vector<2x16x128xf32>
    %90 = vector.shape_cast %89 : vector<2x16x128xf32> to vector<32x128xf32>
    %91 = arith.addf %88, %90 : vector<32x128xf32>
    %cst_76 = arith.constant 0.000000e+00 : f32
    %92 = vector.broadcast %cst_76 : f32 to vector<32x128xf32>
    %93 = arith.maximumf %91, %92 : vector<32x128xf32>
    %c0_77 = arith.constant 0 : index
    %c0_78 = arith.constant 0 : index
    %94 = vector.load %arg10[%c0_77, %c0_78] : memref<32x128xf32, #tpu.memory_space<vmem>>, vector<32x128xf32>
    tpu.vector_store %arg10[%c0_77, %c0_78], %93 {strides = array<i32>} : memref<32x128xf32, #tpu.memory_space<vmem>>, vector<32x128xf32>,
    return
  }
  func.func @transform_0(%arg0: i32) -> (i32, i32, i32) {
    %c0_i32 = arith.constant 0 : i32
    %c0_i32_0 = arith.constant 0 : i32
    %c0_i32_1 = arith.constant 0 : i32
    %c0_i32_2 = arith.constant 0 : i32
    return %c0_i32, %c0_i32_0, %c0_i32_1 : i32, i32, i32
  }
  func.func @transform_1(%arg0: i32) -> (i32, i32) {
    %c0_i32 = arith.constant 0 : i32
    %c0_i32_0 = arith.constant 0 : i32
    %c0_i32_1 = arith.constant 0 : i32
    return %c0_i32, %c0_i32_0 : i32, i32
  }
  func.func @transform_2(%arg0: i32) -> (i32, i32) {
    %c0_i32 = arith.constant 0 : i32
    %c0_i32_0 = arith.constant 0 : i32
    %c0_i32_1 = arith.constant 0 : i32
    return %c0_i32, %c0_i32_0 : i32, i32
  }
  func.func @transform_3(%arg0: i32) -> (i32, i32) {
    %c0_i32 = arith.constant 0 : i32
    %c0_i32_0 = arith.constant 0 : i32
    %c0_i32_1 = arith.constant 0 : i32
    return %c0_i32, %c0_i32_0 : i32, i32
  }
  func.func @transform_4(%arg0: i32) -> (i32, i32) {
    %c0_i32 = arith.constant 0 : i32
    %c0_i32_0 = arith.constant 0 : i32
    %c0_i32_1 = arith.constant 0 : i32
    return %c0_i32, %c0_i32_0 : i32, i32
  }
  func.func @transform_5(%arg0: i32) -> (i32, i32) {
    %c0_i32 = arith.constant 0 : i32
    %c0_i32_0 = arith.constant 0 : i32
    %c0_i32_1 = arith.constant 0 : i32
    return %c0_i32, %c0_i32_0 : i32, i32
  }
  func.func @transform_6(%arg0: i32) -> (i32, i32) {
    %c0_i32 = arith.constant 0 : i32
    %c0_i32_0 = arith.constant 0 : i32
    %c0_i32_1 = arith.constant 0 : i32
    return %c0_i32, %c0_i32_0 : i32, i32
  }
  func.func @transform_7(%arg0: i32) -> (i32, i32) {
    %c0_i32 = arith.constant 0 : i32
    %c0_i32_0 = arith.constant 0 : i32
    %c0_i32_1 = arith.constant 0 : i32
    return %c0_i32, %c0_i32_0 : i32, i32
  }
  func.func @transform_8(%arg0: i32) -> (i32, i32) {
    %c0_i32 = arith.constant 0 : i32
    %c0_i32_0 = arith.constant 0 : i32
    %c0_i32_1 = arith.constant 0 : i32
    return %c0_i32, %c0_i32_0 : i32, i32
  }
  func.func @transform_9(%arg0: i32) -> (i32, i32) {
    %c0_i32 = arith.constant 0 : i32
    %c0_i32_0 = arith.constant 0 : i32
    %c0_i32_1 = arith.constant 0 : i32
    return %c0_i32, %c0_i32_0 : i32, i32
  }
}

</mosaic_0001>

<llo_original>
// kernel: eq.8
$region0: #{eq.8}
  %s0 = inlined_call_operand.vmem [shape: s32[16,8], index: 0, kind: input, shape index: {}]
  %s1 = inlined_call_operand.vmem [shape: s32[128], index: 1, kind: output, shape index: {}]
  $region1: #{eq.8} parent=0
    #allocation0 [shape = 'u8[4096]{0}', space=vmem, size = 0x1000, scoped, tag = 'scoped mem for output reshape']
    %v2 = vld [vmem:[%s0] sm:$0x1]
    %vm3 = vcmask 64512
    %4 = vst.msk [vmem:[#allocation0] sm:$0x1] %vm3, %v2
    %s5 = scalar_lea.vmem %s0, 15
    %v6 = vld [vmem:[%s5] sm:$0x1]
    %7 = vrot.lane.b32.xlu0 %v6, 120
    %v8 = vpop.permute.xlu0 %7
    %vm9 = vcmask 1048512
    %10 = vst.msk [vmem:[#allocation0] sm:$0x1] %vm9, %v8
    %s11 = scalar_lea.vmem %s0, 14
    %v12 = vld [vmem:[%s11] sm:$0x1]
    %13 = vrot.lane.b32.xlu0 %v12, 112
    %v14 = vpop.permute.xlu0 %13
    %vm15 = vcmask 982912
    %16 = vst.msk [vmem:[#allocation0] sm:$0x1] %vm15, %v14
    %s17 = scalar_lea.vmem %s0, 13
    %v18 = vld [vmem:[%s17] sm:$0x1]
    %19 = vrot.lane.b32.xlu0 %v18, 104
    %v20 = vpop.permute.xlu0 %19
    %vm21 = vcmask 917312
    %22 = vst.msk [vmem:[#allocation0] sm:$0x1] %vm21, %v20
    %s23 = scalar_lea.vmem %s0, 12
    %v24 = vld [vmem:[%s23] sm:$0x1]
    %25 = vrot.lane.b32.xlu0 %v24, 96
    %v26 = vpop.permute.xlu0 %25
    %vm27 = vcmask 851712
    %28 = vst.msk [vmem:[#allocation0] sm:$0x1] %vm27, %v26
    %s29 = scalar_lea.vmem %s0, 11
    %v30 = vld [vmem:[%s29] sm:$0x1]
    %31 = vrot.lane.b32.xlu0 %v30, 88
    %v32 = vpop.permute.xlu0 %31
    %vm33 = vcmask 786112
    %34 = vst.msk [vmem:[#allocation0] sm:$0x1] %vm33, %v32
    %s35 = scalar_lea.vmem %s0, 10
    %v36 = vld [vmem:[%s35] sm:$0x1]
    %37 = vrot.lane.b32.xlu0 %v36, 80
    %v38 = vpop.permute.xlu0 %37
    %vm39 = vcmask 720512
    %40 = vst.msk [vmem:[#allocation0] sm:$0x1] %vm39, %v38
    %s41 = scalar_lea.vmem %s0, 9
    %v42 = vld [vmem:[%s41] sm:$0x1]
    %43 = vrot.lane.b32.xlu0 %v42, 72
    %v44 = vpop.permute.xlu0 %43
    %vm45 = vcmask 654912
    %46 = vst.msk [vmem:[#allocation0] sm:$0x1] %vm45, %v44
    %s47 = scalar_lea.vmem %s0, 8
    %v48 = vld [vmem:[%s47] sm:$0x1]
    %49 = vrot.lane.b32.xlu0 %v48, 64
    %v50 = vpop.permute.xlu0 %49
    %vm51 = vcmask 589312
    %52 = vst.msk [vmem:[#allocation0] sm:$0x1] %vm51, %v50
    %s53 = scalar_lea.vmem %s0, 7
    %v54 = vld [vmem:[%s53] sm:$0x1]
    %55 = vrot.lane.b32.xlu0 %v54, 56
    %v56 = vpop.permute.xlu0 %55
    %vm57 = vcmask 523712
    %58 = vst.msk [vmem:[#allocation0] sm:$0x1] %vm57, %v56
    %s59 = scalar_lea.vmem %s0, 6
    %v60 = vld [vmem:[%s59] sm:$0x1]
    %61 = vrot.lane.b32.xlu0 %v60, 48
    %v62 = vpop.permute.xlu0 %61
    %vm63 = vcmask 458112
    %64 = vst.msk [vmem:[#allocation0] sm:$0x1] %vm63, %v62
    %s65 = scalar_lea.vmem %s0, 5
    %v66 = vld [vmem:[%s65] sm:$0x1]
    %67 = vrot.lane.b32.xlu0 %v66, 40
    %v68 = vpop.permute.xlu0 %67
    %vm69 = vcmask 392512
    %70 = vst.msk [vmem:[#allocation0] sm:$0x1] %vm69, %v68
    %s71 = scalar_lea.vmem %s0, 4
    %v72 = vld [vmem:[%s71] sm:$0x1]
    %73 = vrot.lane.b32.xlu0 %v72, 32
    %v74 = vpop.permute.xlu0 %73
    %vm75 = vcmask 326912
    %76 = vst.msk [vmem:[#allocation0] sm:$0x1] %vm75, %v74
    %s77 = scalar_lea.vmem %s0, 3
    %v78 = vld [vmem:[%s77] sm:$0x1]
    %79 = vrot.lane.b32.xlu0 %v78, 24
    %v80 = vpop.permute.xlu0 %79
    %vm81 = vcmask 261312
    %82 = vst.msk [vmem:[#allocation0] sm:$0x1] %vm81, %v80
    %s83 = scalar_lea.vmem %s0, 2
    %v84 = vld [vmem:[%s83] sm:$0x1]
    %85 = vrot.lane.b32.xlu0 %v84, 16
    %v86 = vpop.permute.xlu0 %85
    %vm87 = vcmask 195712
    %88 = vst.msk [vmem:[#allocation0] sm:$0x1] %vm87, %v86
    %s89 = scalar_lea.vmem %s0, 1
    %v90 = vld [vmem:[%s89] sm:$0x1]
    %91 = vrot.lane.b32.xlu0 %v90, 8
    %v92 = vpop.permute.xlu0 %91
    %vm93 = vcmask 130112
    %94 = vst.msk [vmem:[#allocation0] sm:$0x1] %vm93, %v92
    %s96 = sshllo.u32 0, 1
    %v98 = vld [vmem:[#allocation0] sm:%s96]
    %s99 = sshllo.u32 0, 1
    %100 = vst [vmem:[%s1] sm:%s99] %v98

// kernel: basic_block_forward.1
$region0: #{basic_block_forward.1}
  #allocation0 [shape = 'u32[]', space=smem, size = 0x4, offset = 0x4, fixed_abs, tag = 'smem constant byte address 0x4 - core index']
  #allocation1 [shape = 'u32[144,128]{1,0:T(1,128)}', space=vmem, size = 0x12000, scoped, tag = 'internal scratch']
  #allocation2 [shape = 'bf16[2,16,384]{2,1,0:T(16,128)(2,1)}', space=vmem, size = 0x6000, scoped, tag = 'scratch operand']
  %s0 = inlined_call_operand.vmem [shape: f32[2,16,128], index: 0, kind: input, shape index: {}]
  %s1 = inlined_call_operand.vmem [shape: bf16[384,128], index: 1, kind: input, shape index: {}]
  %s2 = inlined_call_operand.vmem [shape: bf16[384,128], index: 2, kind: input, shape index: {}]
  %s3 = inlined_call_operand.vmem [shape: f32[1,8], index: 3, kind: input, shape index: {}]
  %s4 = inlined_call_operand.vmem [shape: f32[1,8], index: 4, kind: input, shape index: {}]
  %s5 = inlined_call_operand.vmem [shape: f32[1,8], index: 5, kind: input, shape index: {}]
  %s6 = inlined_call_operand.vmem [shape: f32[1,8], index: 6, kind: input, shape index: {}]
  %s7 = inlined_call_operand.vmem [shape: f32[128,8], index: 7, kind: input, shape index: {}]
  %s8 = inlined_call_operand.vmem [shape: f32[8,128], index: 8, kind: input, shape index: {}]
  %s9 = inlined_call_operand.vmem [shape: f32[32,128], index: 9, kind: output, shape index: {}]
  %s10 = sld [smem:[#allocation0]]
  $region46: #{basic_block_forward.1} parent=0
    _
  %s12 = ssub.s32 1, %s10
  %s13 = scalar_select 0, %s12, %s10
  // Predicated region
  $region2: #{basic_block_forward.1} parent=0 // pred_check
    _
  $region3: #{basic_block_forward.1} parent=0 // pred_check_branch
    %15 = sbr.rel (0) target = $region5
  $region4: #{basic_block_forward.1} parent=0 // pred_region
    _
  $region5: #{basic_block_forward.1} parent=0 // pred_fallthru
    _
  // Predicated region
  $region6: #{basic_block_forward.1} parent=0 // pred_check
    _
  $region7: #{basic_block_forward.1} parent=0 // pred_check_branch
    %17 = sbr.rel (0) target = $region9
  $region8: #{basic_block_forward.1} parent=0 // pred_region
    _
  $region9: #{basic_block_forward.1} parent=0 // pred_fallthru
    _
  // Predicated region
  $region10: #{basic_block_forward.1} parent=0 // pred_check
    _
  $region11: #{basic_block_forward.1} parent=0 // pred_check_branch
    %19 = sbr.rel (0) target = $region13
  $region12: #{basic_block_forward.1} parent=0 // pred_region
    _
  $region13: #{basic_block_forward.1} parent=0 // pred_fallthru
    _
  // Predicated region
  $region14: #{basic_block_forward.1} parent=0 // pred_check
    _
  $region15: #{basic_block_forward.1} parent=0 // pred_check_branch
    %21 = sbr.rel (0) target = $region17
  $region16: #{basic_block_forward.1} parent=0 // pred_region
    _
  $region17: #{basic_block_forward.1} parent=0 // pred_fallthru
    _
  // Predicated region
  $region18: #{basic_block_forward.1} parent=0 // pred_check
    _
  $region19: #{basic_block_forward.1} parent=0 // pred_check_branch
    %23 = sbr.rel (0) target = $region21
  $region20: #{basic_block_forward.1} parent=0 // pred_region
    _
  $region21: #{basic_block_forward.1} parent=0 // pred_fallthru
    _
  // Predicated region
  $region22: #{basic_block_forward.1} parent=0 // pred_check
    _
  $region23: #{basic_block_forward.1} parent=0 // pred_check_branch
    %25 = sbr.rel (0) target = $region25
  $region24: #{basic_block_forward.1} parent=0 // pred_region
    _
  $region25: #{basic_block_forward.1} parent=0 // pred_fallthru
    _
  // Predicated region
  $region26: #{basic_block_forward.1} parent=0 // pred_check
    _
  $region27: #{basic_block_forward.1} parent=0 // pred_check_branch
    %27 = sbr.rel (0) target = $region29
  $region28: #{basic_block_forward.1} parent=0 // pred_region
    _
  $region29: #{basic_block_forward.1} parent=0 // pred_fallthru
    _
  // Predicated region
  $region30: #{basic_block_forward.1} parent=0 // pred_check
    _
  $region31: #{basic_block_forward.1} parent=0 // pred_check_branch
    %29 = sbr.rel (0) target = $region33
  $region32: #{basic_block_forward.1} parent=0 // pred_region
    _
  $region33: #{basic_block_forward.1} parent=0 // pred_fallthru
    _
  // Predicated region
  $region34: #{basic_block_forward.1} parent=0 // pred_check
    _
  $region35: #{basic_block_forward.1} parent=0 // pred_check_branch
    %31 = sbr.rel (0) target = $region37
  $region36: #{basic_block_forward.1} parent=0 // pred_region
    _
  $region37: #{basic_block_forward.1} parent=0 // pred_fallthru
    _
  %v33 = vld [vmem:[%s7] sm:$0xff]
  %v34 = vld [vmem:[%s7 + $0x8] sm:$0xff]
  %v35 = vld [vmem:[%s7 + $0x10] sm:$0xff]
  %v36 = vld [vmem:[%s7 + $0x18] sm:$0xff]
  %v37 = vld [vmem:[%s7 + $0x20] sm:$0xff]
  %v38 = vld [vmem:[%s7 + $0x28] sm:$0xff]
  %v39 = vld [vmem:[%s7 + $0x30] sm:$0xff]
  %v40 = vld [vmem:[%s7 + $0x38] sm:$0xff]
  %v41 = vld [vmem:[%s7 + $0x40] sm:$0xff]
  %v42 = vld [vmem:[%s7 + $0x48] sm:$0xff]
  %v43 = vld [vmem:[%s7 + $0x50] sm:$0xff]
  %v44 = vld [vmem:[%s7 + $0x58] sm:$0xff]
  %v45 = vld [vmem:[%s7 + $0x60] sm:$0xff]
  %v46 = vld [vmem:[%s7 + $0x68] sm:$0xff]
  %v47 = vld [vmem:[%s7 + $0x70] sm:$0xff]
  %v48 = vld [vmem:[%s7 + $0x78] sm:$0xff]
  %v49 = vld [vmem:[%s8] sm:$0xff]
  %v50 = vld [vmem:[%s0] sm:$0xff]
  %v51 = vld [vmem:[%s0 + $0x8] sm:$0xff]
  %v52 = vld [vmem:[%s0 + $0x10] sm:$0xff]
  %v53 = vld [vmem:[%s0 + $0x18] sm:$0xff]
  %v54 = vpack.c.bf16 %v51, %v50
  %v55 = vpack.c.bf16 %v53, %v52
  %56 = vst [vmem:[#allocation2 + $0x8] sm:$0xff] %v54
  %57 = vst [vmem:[#allocation2 + $0x20] sm:$0xff] %v55
  %v59 = vshrl.u32 %v54, 16
  %v61 = vrot.slane %v59, 7
  %v62 = vshll.u32 %v54, 16
  %v64 = vor.u32 %v61, %v62
  %v66 = vshrl.u32 %v55, 16
  %v68 = vrot.slane %v66, 7
  %v69 = vshll.u32 %v55, 16
  %v71 = vor.u32 %v68, %v69
  %vm74 = vcmask 1047552
  %vm75 = vsmask.f32 7938
  %vm76 = vmand %vm74, %vm75
  %v77 = vld [vmem:[#allocation2] sm:$0xff]
  %v78 = vsel %vm76, %v64, %v77
  %79 = vst [vmem:[#allocation2] sm:$0xff] %v78
  %v80 = vld [vmem:[#allocation2 + $0x18] sm:$0xff]
  %v81 = vsel %vm76, %v71, %v80
  %82 = vst [vmem:[#allocation2 + $0x18] sm:$0xff] %v81
  %vm83 = vcmask 1040384
  %vm84 = vsmask.f32 256
  %vm85 = vmand %vm83, %vm84
  %v86 = vld [vmem:[#allocation2] sm:$0x1]
  %v87 = vsel %vm85, 0, %v86
  %88 = vst [vmem:[#allocation2] sm:$0x1] %v87
  %v89 = vld [vmem:[#allocation2 + $0x18] sm:$0x1]
  %v90 = vsel %vm85, 0, %v89
  %91 = vst [vmem:[#allocation2 + $0x18] sm:$0x1] %v90
  %v92 = vrot.slane %v62, 1
  %v93 = vor.u32 %v59, %v92
  %v94 = vrot.slane %v69, 1
  %v95 = vor.u32 %v66, %v94
  %vm98 = vsmask.f32 7424
  %vm99 = vmand %vm74, %vm98
  %v100 = vld [vmem:[#allocation2 + $0x10] sm:$0xff]
  %v101 = vsel %vm99, %v93, %v100
  %102 = vst [vmem:[#allocation2 + $0x10] sm:$0xff] %v101
  %v103 = vld [vmem:[#allocation2 + $0x28] sm:$0xff]
  %v104 = vsel %vm99, %v95, %v103
  %105 = vst [vmem:[#allocation2 + $0x28] sm:$0xff] %v104
  %vm106 = vcmask 1047559
  %vm107 = vsmask.f32 7966
  %vm108 = vmand %vm106, %vm107
  %v109 = vld [vmem:[#allocation2 + $0x10] sm:$0x80]
  %v110 = vsel %vm108, 0, %v109
  %111 = vst [vmem:[#allocation2 + $0x10] sm:$0x80] %v110
  %v112 = vld [vmem:[#allocation2 + $0x28] sm:$0x80]
  %v113 = vsel %vm108, 0, %v112
  %114 = vst [vmem:[#allocation2 + $0x28] sm:$0x80] %v113
  %v115 = vld [vmem:[#allocation2] sm:$0xff]
  %v116 = vld [vmem:[#allocation2 + $0x8] sm:$0xff]
  %v117 = vld [vmem:[#allocation2 + $0x10] sm:$0xff]
  %v118 = vld [vmem:[#allocation2 + $0x18] sm:$0xff]
  %v119 = vld [vmem:[#allocation2 + $0x20] sm:$0xff]
  %v120 = vld [vmem:[#allocation2 + $0x28] sm:$0xff]
  %v121 = vld [vmem:[%s1] sm:$0xf]
  %v122 = vld [vmem:[%s1 + $0x4] sm:$0xf]
  %v123 = vld [vmem:[%s1 + $0x8] sm:$0xf]
  %v124 = vld [vmem:[%s1 + $0xc] sm:$0xf]
  %v125 = vld [vmem:[%s1 + $0x10] sm:$0xf]
  %v126 = vld [vmem:[%s1 + $0x14] sm:$0xf]
  %v127 = vld [vmem:[%s1 + $0x18] sm:$0xf]
  %v128 = vld [vmem:[%s1 + $0x1c] sm:$0xf]
  %v129 = vld [vmem:[%s1 + $0x20] sm:$0xf]
  %v130 = vld [vmem:[%s1 + $0x24] sm:$0xf]
  %v131 = vld [vmem:[%s1 + $0x28] sm:$0xf]
  %v132 = vld [vmem:[%s1 + $0x2c] sm:$0xf]
  %v133 = vld [vmem:[%s1 + $0x30] sm:$0xf]
  %v134 = vld [vmem:[%s1 + $0x34] sm:$0xf]
  %v135 = vld [vmem:[%s1 + $0x38] sm:$0xf]
  %v136 = vld [vmem:[%s1 + $0x3c] sm:$0xf]
  %v137 = vld [vmem:[%s1 + $0x40] sm:$0xf]
  %v138 = vld [vmem:[%s1 + $0x44] sm:$0xf]
  %v139 = vld [vmem:[%s1 + $0x48] sm:$0xf]
  %v140 = vld [vmem:[%s1 + $0x4c] sm:$0xf]
  %v141 = vld [vmem:[%s1 + $0x50] sm:$0xf]
  %v142 = vld [vmem:[%s1 + $0x54] sm:$0xf]
  %v143 = vld [vmem:[%s1 + $0x58] sm:$0xf]
  %v144 = vld [vmem:[%s1 + $0x5c] sm:$0xf]
  %v145 = vld [vmem:[%s1 + $0x60] sm:$0xf]
  %v146 = vld [vmem:[%s1 + $0x64] sm:$0xf]
  %v147 = vld [vmem:[%s1 + $0x68] sm:$0xf]
  %v148 = vld [vmem:[%s1 + $0x6c] sm:$0xf]
  %v149 = vld [vmem:[%s1 + $0x70] sm:$0xf]
  %v150 = vld [vmem:[%s1 + $0x74] sm:$0xf]
  %v151 = vld [vmem:[%s1 + $0x78] sm:$0xf]
  %v152 = vld [vmem:[%s1 + $0x7c] sm:$0xf]
  %v153 = vld [vmem:[%s1 + $0x80] sm:$0xf]
  %v154 = vld [vmem:[%s1 + $0x84] sm:$0xf]
  %v155 = vld [vmem:[%s1 + $0x88] sm:$0xf]
  %v156 = vld [vmem:[%s1 + $0x8c] sm:$0xf]
  %v157 = vld [vmem:[%s1 + $0x90] sm:$0xf]
  %v158 = vld [vmem:[%s1 + $0x94] sm:$0xf]
  %v159 = vld [vmem:[%s1 + $0x98] sm:$0xf]
  %v160 = vld [vmem:[%s1 + $0x9c] sm:$0xf]
  %v161 = vld [vmem:[%s1 + $0xa0] sm:$0xf]
  %v162 = vld [vmem:[%s1 + $0xa4] sm:$0xf]
  %v163 = vld [vmem:[%s1 + $0xa8] sm:$0xf]
  %v164 = vld [vmem:[%s1 + $0xac] sm:$0xf]
  %v165 = vld [vmem:[%s1 + $0xb0] sm:$0xf]
  %v166 = vld [vmem:[%s1 + $0xb4] sm:$0xf]
  %v167 = vld [vmem:[%s1 + $0xb8] sm:$0xf]
  %v168 = vld [vmem:[%s1 + $0xbc] sm:$0xf]
  %v217 = vunpack.c.l.b16 %v121
  %v218 = vunpack.c.l.b16 %v122
  %v219 = vunpack.c.l.b16 %v123
  %v220 = vunpack.c.l.b16 %v124
  %v221 = vunpack.c.l.b16 %v125
  %v222 = vunpack.c.l.b16 %v126
  %v223 = vunpack.c.l.b16 %v127
  %v224 = vunpack.c.l.b16 %v128
  %v225 = vunpack.c.l.b16 %v129
  %v226 = vunpack.c.l.b16 %v130
  %v227 = vunpack.c.l.b16 %v131
  %v228 = vunpack.c.l.b16 %v132
  %v229 = vunpack.c.l.b16 %v133
  %v230 = vunpack.c.l.b16 %v134
  %v231 = vunpack.c.l.b16 %v135
  %v232 = vunpack.c.l.b16 %v136
  %v233 = vunpack.c.l.b16 %v137
  %v234 = vunpack.c.l.b16 %v138
  %v235 = vunpack.c.l.b16 %v139
  %v236 = vunpack.c.l.b16 %v140
  %v237 = vunpack.c.l.b16 %v141
  %v238 = vunpack.c.l.b16 %v142
  %v239 = vunpack.c.l.b16 %v143
  %v240 = vunpack.c.l.b16 %v144
  %v241 = vunpack.c.l.b16 %v145
  %v242 = vunpack.c.l.b16 %v146
  %v243 = vunpack.c.l.b16 %v147
  %v244 = vunpack.c.l.b16 %v148
  %v245 = vunpack.c.l.b16 %v149
  %v246 = vunpack.c.l.b16 %v150
  %v247 = vunpack.c.l.b16 %v151
  %v248 = vunpack.c.l.b16 %v152
  %v249 = vunpack.c.l.b16 %v153
  %v250 = vunpack.c.l.b16 %v154
  %v251 = vunpack.c.l.b16 %v155
  %v252 = vunpack.c.l.b16 %v156
  %v253 = vunpack.c.l.b16 %v157
  %v254 = vunpack.c.l.b16 %v158
  %v255 = vunpack.c.l.b16 %v159
  %v256 = vunpack.c.l.b16 %v160
  %v257 = vunpack.c.l.b16 %v161
  %v258 = vunpack.c.l.b16 %v162
  %v259 = vunpack.c.l.b16 %v163
  %v260 = vunpack.c.l.b16 %v164
  %v261 = vunpack.c.l.b16 %v165
  %v262 = vunpack.c.l.b16 %v166
  %v263 = vunpack.c.l.b16 %v167
  %v264 = vunpack.c.l.b16 %v168
  %v265 = vpack.c.b16 %v218, %v217
  %v266 = vpack.c.b16 %v220, %v219
  %v267 = vpack.c.b16 %v222, %v221
  %v268 = vpack.c.b16 %v224, %v223
  %v269 = vpack.c.b16 %v226, %v225
  %v270 = vpack.c.b16 %v228, %v227
  %v271 = vpack.c.b16 %v230, %v229
  %v272 = vpack.c.b16 %v232, %v231
  %v273 = vpack.c.b16 %v234, %v233
  %v274 = vpack.c.b16 %v236, %v235
  %v275 = vpack.c.b16 %v238, %v237
  %v276 = vpack.c.b16 %v240, %v239
  %v277 = vpack.c.b16 %v242, %v241
  %v278 = vpack.c.b16 %v244, %v243
  %v279 = vpack.c.b16 %v246, %v245
  %v280 = vpack.c.b16 %v248, %v247
  %v281 = vpack.c.b16 %v250, %v249
  %v282 = vpack.c.b16 %v252, %v251
  %v283 = vpack.c.b16 %v254, %v253
  %v284 = vpack.c.b16 %v256, %v255
  %v285 = vpack.c.b16 %v258, %v257
  %v286 = vpack.c.b16 %v260, %v259
  %v287 = vpack.c.b16 %v262, %v261
  %v288 = vpack.c.b16 %v264, %v263
  %313 = vmatprep.subr.bf16.mxu0 0
  %314 = vmatpush1.bf16.msra.mxu0 %v265
  %315 = vmatprep.subr.bf16.mxu0 0
  %316 = vmatpush1.bf16.msra.mxu0 %v266
  %317 = vmatprep.subr.bf16.mxu0 0
  %318 = vmatpush1.bf16.msra.mxu0 %v267
  %319 = vmatprep.subr.bf16.mxu0 0
  %320 = vmatpush1.bf16.msra.mxu0 %v268
  %321 = vmatprep.subr.bf16.mxu0 0
  %322 = vmatpush1.bf16.msra.mxu0 %v269
  %323 = vmatprep.subr.bf16.mxu0 0
  %324 = vmatpush1.bf16.msra.mxu0 %v270
  %325 = vmatprep.subr.bf16.mxu0 0
  %326 = vmatpush1.bf16.msra.mxu0 %v271
  %327 = vmatprep.subr.bf16.mxu0 0
  %328 = vmatpush1.bf16.msra.mxu0 %v272
  %329 = vmatprep.subr.bf16.mxu0 0
  %330 = vmatpush1.bf16.msra.mxu0 %v273
  %331 = vmatprep.subr.bf16.mxu0 0
  %332 = vmatpush1.bf16.msra.mxu0 %v274
  %333 = vmatprep.subr.bf16.mxu0 0
  %334 = vmatpush1.bf16.msra.mxu0 %v275
  %335 = vmatprep.subr.bf16.mxu0 0
  %336 = vmatpush1.bf16.msra.mxu0 %v276
  %337 = vmatprep.subr.bf16.mxu0 0
  %338 = vmatpush1.bf16.msra.mxu0 %v277
  %339 = vmatprep.subr.bf16.mxu0 0
  %340 = vmatpush1.bf16.msra.mxu0 %v278
  %341 = vmatprep.subr.bf16.mxu0 0
  %342 = vmatpush1.bf16.msra.mxu0 %v279
  %343 = vmatprep.subr.bf16.mxu0 0
  %344 = vmatpush1.bf16.msra.mxu0 %v280
  %345 = vmatprep.mubr.bf16.mxu0 %v116
  %346 = vmatmul.mubr.bf16.gmra.mrb[0].mxu0 %v115
  %v347 = vpop.f32.mrb[0].mxu0
  %v348 = vadd.f32 0.0, %v347
  %v349 = vpop.f32.mrb[0].mxu0
  %v350 = vpop.f32.mrb[0].mxu0
  %v351 = vadd.f32 0.0, %v350
  %v352 = vpop.f32.mrb[0].mxu0
  %353 = vmatprep.mubr.bf16.mxu0 %v119
  %354 = vmatmul.mubr.bf16.gmra.mrb[0].mxu0 %v118
  %v355 = vpop.f32.mrb[0].mxu0
  %v356 = vadd.f32 0.0, %v355
  %v357 = vpop.f32.mrb[0].mxu0
  %v358 = vpop.f32.mrb[0].mxu0
  %v359 = vadd.f32 0.0, %v358
  %v360 = vpop.f32.mrb[0].mxu0
  %361 = vdwg.mxu0
  %362 = vmatprep.subr.bf16.mxu0 0
  %363 = vmatpush1.bf16.msra.mxu0 %v281
  %364 = vmatprep.subr.bf16.mxu0 0
  %365 = vmatpush1.bf16.msra.mxu0 %v282
  %366 = vmatprep.subr.bf16.mxu0 0
  %367 = vmatpush1.bf16.msra.mxu0 %v283
  %368 = vmatprep.subr.bf16.mxu0 0
  %369 = vmatpush1.bf16.msra.mxu0 %v284
  %370 = vmatprep.subr.bf16.mxu0 0
  %371 = vmatpush1.bf16.msra.mxu0 %v285
  %372 = vmatprep.subr.bf16.mxu0 0
  %373 = vmatpush1.bf16.msra.mxu0 %v286
  %374 = vmatprep.subr.bf16.mxu0 0
  %375 = vmatpush1.bf16.msra.mxu0 %v287
  %376 = vmatprep.subr.bf16.mxu0 0
  %377 = vmatpush1.bf16.msra.mxu0 %v288
  %378 = vmatprep.subr.bf16.mxu0 0
  %379 = vmatpush1.bf16.msra.mxu0 0
  %380 = vmatprep.subr.bf16.mxu0 0
  %381 = vmatpush1.bf16.msra.mxu0 0
  %382 = vmatprep.subr.bf16.mxu0 0
  %383 = vmatpush1.bf16.msra.mxu0 0
  %384 = vmatprep.subr.bf16.mxu0 0
  %385 = vmatpush1.bf16.msra.mxu0 0
  %386 = vmatprep.subr.bf16.mxu0 0
  %387 = vmatpush1.bf16.msra.mxu0 0
  %388 = vmatprep.subr.bf16.mxu0 0
  %389 = vmatpush1.bf16.msra.mxu0 0
  %390 = vmatprep.subr.bf16.mxu0 0
  %391 = vmatpush1.bf16.msra.mxu0 0
  %392 = vmatprep.subr.bf16.mxu0 0
  %393 = vmatpush1.bf16.msra.mxu0 0
  %394 = vmatprep.mubr.bf16.mxu0 0
  %395 = vmatmul.mubr.bf16.gmra.mrb[0].mxu0 %v117
  %v396 = vpop.f32.mrb[0].mxu0
  %v397 = vadd.f32 %v348, %v396
  %v398 = vpop.f32.mrb[0].mxu0
  %v399 = vpop.f32.mrb[0].mxu0
  %v400 = vadd.f32 %v351, %v399
  %v401 = vpop.f32.mrb[0].mxu0
  %402 = vmatprep.mubr.bf16.mxu0 0
  %403 = vmatmul.mubr.bf16.gmra.mrb[0].mxu0 %v120
  %v404 = vpop.f32.mrb[0].mxu0
  %v405 = vadd.f32 %v356, %v404
  %v406 = vpop.f32.mrb[0].mxu0
  %v407 = vpop.f32.mrb[0].mxu0
  %v408 = vadd.f32 %v359, %v407
  %v409 = vpop.f32.mrb[0].mxu0
  %410 = vdwg.mxu0
  %v411 = vld [vmem:[%s3] sm:$0x1]
  %v412 = vld [vmem:[%s4] sm:$0x1]
  %v413 = vadd.f32 %v397, %v400
  %v414 = vadd.f32 %v413, %v405
  %v415 = vadd.f32 %v414, %v408
  %v416 = vrot.slane %v415, 4
  %v417 = vadd.f32 %v415, %v416
  %v418 = vrot.slane %v417, 2
  %v419 = vadd.f32 %v417, %v418
  %v420 = vrot.slane %v419, 1
  %v421 = vadd.f32 %v419, %v420
  %422 = vmatprep.subr.mxu0 0.0
  %423 = vmatpush1.msra.mxu0 %v33
  %424 = vmatprep.subr.mxu0 0.0
  %425 = vmatpush1.msra.mxu0 %v34
  %426 = vmatprep.subr.mxu0 0.0
  %427 = vmatpush1.msra.mxu0 %v35
  %428 = vmatprep.subr.mxu0 0.0
  %429 = vmatpush1.msra.mxu0 %v36
  %430 = vmatprep.subr.mxu0 0.0
  %431 = vmatpush1.msra.mxu0 %v37
  %432 = vmatprep.subr.mxu0 0.0
  %433 = vmatpush1.msra.mxu0 %v38
  %434 = vmatprep.subr.mxu0 0.0
  %435 = vmatpush1.msra.mxu0 %v39
  %436 = vmatprep.subr.mxu0 0.0
  %437 = vmatpush1.msra.mxu0 %v40
  %438 = vmatprep.subr.mxu0 0.0
  %439 = vmatpush1.msra.mxu0 %v41
  %440 = vmatprep.subr.mxu0 0.0
  %441 = vmatpush1.msra.mxu0 %v42
  %442 = vmatprep.subr.mxu0 0.0
  %443 = vmatpush1.msra.mxu0 %v43
  %444 = vmatprep.subr.mxu0 0.0
  %445 = vmatpush1.msra.mxu0 %v44
  %446 = vmatprep.subr.mxu0 0.0
  %447 = vmatpush1.msra.mxu0 %v45
  %448 = vmatprep.subr.mxu0 0.0
  %449 = vmatpush1.msra.mxu0 %v46
  %450 = vmatprep.subr.mxu0 0.0
  %451 = vmatpush1.msra.mxu0 %v47
  %452 = vmatprep.subr.mxu0 0.0
  %453 = vmatpush1.msra.mxu0 %v48
  %454 = vmatprep.subr.mxu0 0.0
  %455 = vmatpush1.msra.mxu0 0.0
  %456 = vmatprep.subr.mxu0 0.0
  %457 = vmatpush1.msra.mxu0 0.0
  %458 = vmatprep.subr.mxu0 0.0
  %459 = vmatpush1.msra.mxu0 0.0
  %460 = vmatprep.subr.mxu0 0.0
  %461 = vmatpush1.msra.mxu0 0.0
  %462 = vmatprep.subr.mxu0 0.0
  %463 = vmatpush1.msra.mxu0 0.0
  %464 = vmatprep.subr.mxu0 0.0
  %465 = vmatpush1.msra.mxu0 0.0
  %466 = vmatprep.subr.mxu0 0.0
  %467 = vmatpush1.msra.mxu0 0.0
  %468 = vmatprep.subr.mxu0 0.0
  %469 = vmatpush1.msra.mxu0 0.0
  %470 = vmatprep.subr.mxu0 0.0
  %471 = vmatpush1.msra.mxu0 0.0
  %472 = vmatprep.subr.mxu0 0.0
  %473 = vmatpush1.msra.mxu0 0.0
  %474 = vmatprep.subr.mxu0 0.0
  %475 = vmatpush1.msra.mxu0 0.0
  %476 = vmatprep.subr.mxu0 0.0
  %477 = vmatpush1.msra.mxu0 0.0
  %478 = vmatprep.subr.mxu0 0.0
  %479 = vmatpush1.msra.mxu0 0.0
  %480 = vmatprep.subr.mxu0 0.0
  %481 = vmatpush1.msra.mxu0 0.0
  %482 = vmatprep.subr.mxu0 0.0
  %483 = vmatpush1.msra.mxu0 0.0
  %484 = vmatprep.subr.mxu0 0.0
  %485 = vmatpush1.msra.mxu0 0.0
  %486 = vmatprep.mubr.f32.mxu0 0.0
  %487 = vmatmul.mubr.f32.gmra.mrb[0].mxu0 %v421
  %v488 = vpop.f32.mrb[0].mxu0
  %v489 = vadd.f32 0.0, %v488
  %v490 = vpop.f32.mrb[0].mxu0
  %491 = vdwg.mxu0
  %v492 = vmul.f32 %v397, %v397
  %v493 = vmul.f32 %v400, %v400
  %v494 = vmul.f32 %v405, %v405
  %v495 = vmul.f32 %v408, %v408
  %v496 = vadd.f32 %v492, %v493
  %v497 = vadd.f32 %v496, %v494
  %v498 = vadd.f32 %v497, %v495
  %v499 = vrot.slane %v498, 4
  %v500 = vadd.f32 %v498, %v499
  %v501 = vrot.slane %v500, 2
  %v502 = vadd.f32 %v500, %v501
  %v503 = vrot.slane %v502, 1
  %v504 = vadd.f32 %v502, %v503
  %505 = vmatprep.subr.mxu0 0.0
  %506 = vmatpush1.msra.mxu0 %v33
  %507 = vmatprep.subr.mxu0 0.0
  %508 = vmatpush1.msra.mxu0 %v34
  %509 = vmatprep.subr.mxu0 0.0
  %510 = vmatpush1.msra.mxu0 %v35
  %511 = vmatprep.subr.mxu0 0.0
  %512 = vmatpush1.msra.mxu0 %v36
  %513 = vmatprep.subr.mxu0 0.0
  %514 = vmatpush1.msra.mxu0 %v37
  %515 = vmatprep.subr.mxu0 0.0
  %516 = vmatpush1.msra.mxu0 %v38
  %517 = vmatprep.subr.mxu0 0.0
  %518 = vmatpush1.msra.mxu0 %v39
  %519 = vmatprep.subr.mxu0 0.0
  %520 = vmatpush1.msra.mxu0 %v40
  %521 = vmatprep.subr.mxu0 0.0
  %522 = vmatpush1.msra.mxu0 %v41
  %523 = vmatprep.subr.mxu0 0.0
  %524 = vmatpush1.msra.mxu0 %v42
  %525 = vmatprep.subr.mxu0 0.0
  %526 = vmatpush1.msra.mxu0 %v43
  %527 = vmatprep.subr.mxu0 0.0
  %528 = vmatpush1.msra.mxu0 %v44
  %529 = vmatprep.subr.mxu0 0.0
  %530 = vmatpush1.msra.mxu0 %v45
  %531 = vmatprep.subr.mxu0 0.0
  %532 = vmatpush1.msra.mxu0 %v46
  %533 = vmatprep.subr.mxu0 0.0
  %534 = vmatpush1.msra.mxu0 %v47
  %535 = vmatprep.subr.mxu0 0.0
  %536 = vmatpush1.msra.mxu0 %v48
  %537 = vmatprep.subr.mxu0 0.0
  %538 = vmatpush1.msra.mxu0 0.0
  %539 = vmatprep.subr.mxu0 0.0
  %540 = vmatpush1.msra.mxu0 0.0
  %541 = vmatprep.subr.mxu0 0.0
  %542 = vmatpush1.msra.mxu0 0.0
  %543 = vmatprep.subr.mxu0 0.0
  %544 = vmatpush1.msra.mxu0 0.0
  %545 = vmatprep.subr.mxu0 0.0
  %546 = vmatpush1.msra.mxu0 0.0
  %547 = vmatprep.subr.mxu0 0.0
  %548 = vmatpush1.msra.mxu0 0.0
  %549 = vmatprep.subr.mxu0 0.0
  %550 = vmatpush1.msra.mxu0 0.0
  %551 = vmatprep.subr.mxu0 0.0
  %552 = vmatpush1.msra.mxu0 0.0
  %553 = vmatprep.subr.mxu0 0.0
  %554 = vmatpush1.msra.mxu0 0.0
  %555 = vmatprep.subr.mxu0 0.0
  %556 = vmatpush1.msra.mxu0 0.0
  %557 = vmatprep.subr.mxu0 0.0
  %558 = vmatpush1.msra.mxu0 0.0
  %559 = vmatprep.subr.mxu0 0.0
  %560 = vmatpush1.msra.mxu0 0.0
  %561 = vmatprep.subr.mxu0 0.0
  %562 = vmatpush1.msra.mxu0 0.0
  %563 = vmatprep.subr.mxu0 0.0
  %564 = vmatpush1.msra.mxu0 0.0
  %565 = vmatprep.subr.mxu0 0.0
  %566 = vmatpush1.msra.mxu0 0.0
  %567 = vmatprep.subr.mxu0 0.0
  %568 = vmatpush1.msra.mxu0 0.0
  %569 = vmatprep.mubr.f32.mxu0 0.0
  %570 = vmatmul.mubr.f32.gmra.mrb[0].mxu0 %v504
  %v571 = vpop.f32.mrb[0].mxu0
  %v572 = vadd.f32 0.0, %v571
  %v573 = vpop.f32.mrb[0].mxu0
  %574 = vdwg.mxu0
  %v575 = vmul.f32 %v489, 0.001953125
  %v576 = vmul.f32 %v572, 0.001953125
  %v577 = vmul.f32 %v575, %v575
  %v578 = vsub.f32 %v576, %v577
  %v579 = vmax.f32 %v578, 0.0
  %v580 = vadd.f32 %v579, 1e-05
  %v581 = vrsqrt.pop %v580
  %v582 = vmul.f32 %v411, %v581
  %v583 = vmul.f32 %v575, %v582
  %v584 = vsub.f32 %v412, %v583
  %vm585 = vcmask 64512
  %v587 = vsel %vm585, %v582, 0
  %589 = vmatprep.subr.mxu0 0.0
  %590 = vmatpush1.msra.mxu0 %v49
  %591 = vmatprep.subr.mxu0 0.0
  %592 = vmatpush1.msra.mxu0 0.0
  %593 = vmatprep.subr.mxu0 0.0
  %594 = vmatpush1.msra.mxu0 0.0
  %595 = vmatprep.subr.mxu0 0.0
  %596 = vmatpush1.msra.mxu0 0.0
  %597 = vmatprep.subr.mxu0 0.0
  %598 = vmatpush1.msra.mxu0 0.0
  %599 = vmatprep.subr.mxu0 0.0
  %600 = vmatpush1.msra.mxu0 0.0
  %601 = vmatprep.subr.mxu0 0.0
  %602 = vmatpush1.msra.mxu0 0.0
  %603 = vmatprep.subr.mxu0 0.0
  %604 = vmatpush1.msra.mxu0 0.0
  %605 = vmatprep.subr.mxu0 0.0
  %606 = vmatpush1.msra.mxu0 0.0
  %607 = vmatprep.subr.mxu0 0.0
  %608 = vmatpush1.msra.mxu0 0.0
  %609 = vmatprep.subr.mxu0 0.0
  %610 = vmatpush1.msra.mxu0 0.0
  %611 = vmatprep.subr.mxu0 0.0
  %612 = vmatpush1.msra.mxu0 0.0
  %613 = vmatprep.subr.mxu0 0.0
  %614 = vmatpush1.msra.mxu0 0.0
  %615 = vmatprep.subr.mxu0 0.0
  %616 = vmatpush1.msra.mxu0 0.0
  %617 = vmatprep.subr.mxu0 0.0
  %618 = vmatpush1.msra.mxu0 0.0
  %619 = vmatprep.subr.mxu0 0.0
  %620 = vmatpush1.msra.mxu0 0.0
  %621 = vmatprep.subr.mxu0 0.0
  %622 = vmatpush1.msra.mxu0 0.0
  %623 = vmatprep.subr.mxu0 0.0
  %624 = vmatpush1.msra.mxu0 0.0
  %625 = vmatprep.subr.mxu0 0.0
  %626 = vmatpush1.msra.mxu0 0.0
  %627 = vmatprep.subr.mxu0 0.0
  %628 = vmatpush1.msra.mxu0 0.0
  %629 = vmatprep.subr.mxu0 0.0
  %630 = vmatpush1.msra.mxu0 0.0
  %631 = vmatprep.subr.mxu0 0.0
  %632 = vmatpush1.msra.mxu0 0.0
  %633 = vmatprep.subr.mxu0 0.0
  %634 = vmatpush1.msra.mxu0 0.0
  %635 = vmatprep.subr.mxu0 0.0
  %636 = vmatpush1.msra.mxu0 0.0
  %637 = vmatprep.subr.mxu0 0.0
  %638 = vmatpush1.msra.mxu0 0.0
  %639 = vmatprep.subr.mxu0 0.0
  %640 = vmatpush1.msra.mxu0 0.0
  %641 = vmatprep.subr.mxu0 0.0
  %642 = vmatpush1.msra.mxu0 0.0
  %643 = vmatprep.subr.mxu0 0.0
  %644 = vmatpush1.msra.mxu0 0.0
  %645 = vmatprep.subr.mxu0 0.0
  %646 = vmatpush1.msra.mxu0 0.0
  %647 = vmatprep.subr.mxu0 0.0
  %648 = vmatpush1.msra.mxu0 0.0
  %649 = vmatprep.subr.mxu0 0.0
  %650 = vmatpush1.msra.mxu0 0.0
  %651 = vmatprep.subr.mxu0 0.0
  %652 = vmatpush1.msra.mxu0 0.0
  %653 = vmatprep.mubr.f32.mxu0 0.0
  %654 = vmatmul.mubr.f32.gmra.mrb[0].mxu0 %v587
  %v655 = vpop.f32.mrb[0].mxu0
  %v656 = vadd.f32 0.0, %v655
  %v657 = vpop.f32.mrb[0].mxu0
  %658 = vdwg.mxu0
  %v660 = vsel %vm585, %v584, 0
  %662 = vmatprep.subr.mxu0 0.0
  %663 = vmatpush1.msra.mxu0 %v49
  %664 = vmatprep.subr.mxu0 0.0
  %665 = vmatpush1.msra.mxu0 0.0
  %666 = vmatprep.subr.mxu0 0.0
  %667 = vmatpush1.msra.mxu0 0.0
  %668 = vmatprep.subr.mxu0 0.0
  %669 = vmatpush1.msra.mxu0 0.0
  %670 = vmatprep.subr.mxu0 0.0
  %671 = vmatpush1.msra.mxu0 0.0
  %672 = vmatprep.subr.mxu0 0.0
  %673 = vmatpush1.msra.mxu0 0.0
  %674 = vmatprep.subr.mxu0 0.0
  %675 = vmatpush1.msra.mxu0 0.0
  %676 = vmatprep.subr.mxu0 0.0
  %677 = vmatpush1.msra.mxu0 0.0
  %678 = vmatprep.subr.mxu0 0.0
  %679 = vmatpush1.msra.mxu0 0.0
  %680 = vmatprep.subr.mxu0 0.0
  %681 = vmatpush1.msra.mxu0 0.0
  %682 = vmatprep.subr.mxu0 0.0
  %683 = vmatpush1.msra.mxu0 0.0
  %684 = vmatprep.subr.mxu0 0.0
  %685 = vmatpush1.msra.mxu0 0.0
  %686 = vmatprep.subr.mxu0 0.0
  %687 = vmatpush1.msra.mxu0 0.0
  %688 = vmatprep.subr.mxu0 0.0
  %689 = vmatpush1.msra.mxu0 0.0
  %690 = vmatprep.subr.mxu0 0.0
  %691 = vmatpush1.msra.mxu0 0.0
  %692 = vmatprep.subr.mxu0 0.0
  %693 = vmatpush1.msra.mxu0 0.0
  %694 = vmatprep.subr.mxu0 0.0
  %695 = vmatpush1.msra.mxu0 0.0
  %696 = vmatprep.subr.mxu0 0.0
  %697 = vmatpush1.msra.mxu0 0.0
  %698 = vmatprep.subr.mxu0 0.0
  %699 = vmatpush1.msra.mxu0 0.0
  %700 = vmatprep.subr.mxu0 0.0
  %701 = vmatpush1.msra.mxu0 0.0
  %702 = vmatprep.subr.mxu0 0.0
  %703 = vmatpush1.msra.mxu0 0.0
  %704 = vmatprep.subr.mxu0 0.0
  %705 = vmatpush1.msra.mxu0 0.0
  %706 = vmatprep.subr.mxu0 0.0
  %707 = vmatpush1.msra.mxu0 0.0
  %708 = vmatprep.subr.mxu0 0.0
  %709 = vmatpush1.msra.mxu0 0.0
  %710 = vmatprep.subr.mxu0 0.0
  %711 = vmatpush1.msra.mxu0 0.0
  %712 = vmatprep.subr.mxu0 0.0
  %713 = vmatpush1.msra.mxu0 0.0
  %714 = vmatprep.subr.mxu0 0.0
  %715 = vmatpush1.msra.mxu0 0.0
  %716 = vmatprep.subr.mxu0 0.0
  %717 = vmatpush1.msra.mxu0 0.0
  %718 = vmatprep.subr.mxu0 0.0
  %719 = vmatpush1.msra.mxu0 0.0
  %720 = vmatprep.subr.mxu0 0.0
  %721 = vmatpush1.msra.mxu0 0.0
  %722 = vmatprep.subr.mxu0 0.0
  %723 = vmatpush1.msra.mxu0 0.0
  %724 = vmatprep.subr.mxu0 0.0
  %725 = vmatpush1.msra.mxu0 0.0
  %726 = vmatprep.mubr.f32.mxu0 0.0
  %727 = vmatmul.mubr.f32.gmra.mrb[0].mxu0 %v660
  %v728 = vpop.f32.mrb[0].mxu0
  %v729 = vadd.f32 0.0, %v728
  %v730 = vpop.f32.mrb[0].mxu0
  %731 = vdwg.mxu0
  %v732 = vlaneseq
  %v733 = vshrl.u32 %v732, 7
  %v734 = vsub.s32 0, %v733
  %v735 = vrot.slane %v656, %v734
  %v736 = vmul.f32 %v397, %v735
  %v737 = vmul.f32 %v400, %v735
  %v738 = vmul.f32 %v405, %v735
  %v739 = vmul.f32 %v408, %v735
  %v740 = vlaneseq
  %v741 = vshrl.u32 %v740, 7
  %v742 = vsub.s32 0, %v741
  %v743 = vrot.slane %v729, %v742
  %v744 = vadd.f32 %v736, %v743
  %v745 = vadd.f32 %v737, %v743
  %v746 = vadd.f32 %v738, %v743
  %v747 = vadd.f32 %v739, %v743
  %v748 = vmax.f32 %v744, 0.0
  %v749 = vmax.f32 %v745, 0.0
  %v750 = vmax.f32 %v746, 0.0
  %v751 = vmax.f32 %v747, 0.0
  %v752 = vpack.c.bf16 %v749, %v748
  %v753 = vpack.c.bf16 %v751, %v750
  %754 = vst [vmem:[#allocation2 + $0x8] sm:$0xff] %v752
  %755 = vst [vmem:[#allocation2 + $0x20] sm:$0xff] %v753
  %v757 = vshrl.u32 %v752, 16
  %v759 = vrot.slane %v757, 7
  %v760 = vshll.u32 %v752, 16
  %v762 = vor.u32 %v759, %v760
  %v764 = vshrl.u32 %v753, 16
  %v766 = vrot.slane %v764, 7
  %v767 = vshll.u32 %v753, 16
  %v769 = vor.u32 %v766, %v767
  %v772 = vld [vmem:[#allocation2] sm:$0xff]
  %v773 = vsel %vm76, %v762, %v772
  %774 = vst [vmem:[#allocation2] sm:$0xff] %v773
  %v775 = vld [vmem:[#allocation2 + $0x18] sm:$0xff]
  %v776 = vsel %vm76, %v769, %v775
  %777 = vst [vmem:[#allocation2 + $0x18] sm:$0xff] %v776
  %v778 = vld [vmem:[#allocation2] sm:$0x1]
  %v779 = vsel %vm85, 0, %v778
  %780 = vst [vmem:[#allocation2] sm:$0x1] %v779
  %v781 = vld [vmem:[#allocation2 + $0x18] sm:$0x1]
  %v782 = vsel %vm85, 0, %v781
  %783 = vst [vmem:[#allocation2 + $0x18] sm:$0x1] %v782
  %v784 = vrot.slane %v760, 1
  %v785 = vor.u32 %v757, %v784
  %v786 = vrot.slane %v767, 1
  %v787 = vor.u32 %v764, %v786
  %v790 = vld [vmem:[#allocation2 + $0x10] sm:$0xff]
  %v791 = vsel %vm99, %v785, %v790
  %792 = vst [vmem:[#allocation2 + $0x10] sm:$0xff] %v791
  %v793 = vld [vmem:[#allocation2 + $0x28] sm:$0xff]
  %v794 = vsel %vm99, %v787, %v793
  %795 = vst [vmem:[#allocation2 + $0x28] sm:$0xff] %v794
  %v796 = vld [vmem:[#allocation2 + $0x10] sm:$0x80]
  %v797 = vsel %vm108, 0, %v796
  %798 = vst [vmem:[#allocation2 + $0x10] sm:$0x80] %v797
  %v799 = vld [vmem:[#allocation2 + $0x28] sm:$0x80]
  %v800 = vsel %vm108, 0, %v799
  %801 = vst [vmem:[#allocation2 + $0x28] sm:$0x80] %v800
  %v802 = vld [vmem:[#allocation2] sm:$0xff]
  %v803 = vld [vmem:[#allocation2 + $0x8] sm:$0xff]
  %v804 = vld [vmem:[#allocation2 + $0x10] sm:$0xff]
  %v805 = vld [vmem:[#allocation2 + $0x18] sm:$0xff]
  %v806 = vld [vmem:[#allocation2 + $0x20] sm:$0xff]
  %v807 = vld [vmem:[#allocation2 + $0x28] sm:$0xff]
  %v808 = vld [vmem:[%s2] sm:$0xf]
  %v809 = vld [vmem:[%s2 + $0x4] sm:$0xf]
  %v810 = vld [vmem:[%s2 + $0x8] sm:$0xf]
  %v811 = vld [vmem:[%s2 + $0xc] sm:$0xf]
  %v812 = vld [vmem:[%s2 + $0x10] sm:$0xf]
  %v813 = vld [vmem:[%s2 + $0x14] sm:$0xf]
  %v814 = vld [vmem:[%s2 + $0x18] sm:$0xf]
  %v815 = vld [vmem:[%s2 + $0x1c] sm:$0xf]
  %v816 = vld [vmem:[%s2 + $0x20] sm:$0xf]
  %v817 = vld [vmem:[%s2 + $0x24] sm:$0xf]
  %v818 = vld [vmem:[%s2 + $0x28] sm:$0xf]
  %v819 = vld [vmem:[%s2 + $0x2c] sm:$0xf]
  %v820 = vld [vmem:[%s2 + $0x30] sm:$0xf]
  %v821 = vld [vmem:[%s2 + $0x34] sm:$0xf]
  %v822 = vld [vmem:[%s2 + $0x38] sm:$0xf]
  %v823 = vld [vmem:[%s2 + $0x3c] sm:$0xf]
  %v824 = vld [vmem:[%s2 + $0x40] sm:$0xf]
  %v825 = vld [vmem:[%s2 + $0x44] sm:$0xf]
  %v826 = vld [vmem:[%s2 + $0x48] sm:$0xf]
  %v827 = vld [vmem:[%s2 + $0x4c] sm:$0xf]
  %v828 = vld [vmem:[%s2 + $0x50] sm:$0xf]
  %v829 = vld [vmem:[%s2 + $0x54] sm:$0xf]
  %v830 = vld [vmem:[%s2 + $0x58] sm:$0xf]
  %v831 = vld [vmem:[%s2 + $0x5c] sm:$0xf]
  %v832 = vld [vmem:[%s2 + $0x60] sm:$0xf]
  %v833 = vld [vmem:[%s2 + $0x64] sm:$0xf]
  %v834 = vld [vmem:[%s2 + $0x68] sm:$0xf]
  %v835 = vld [vmem:[%s2 + $0x6c] sm:$0xf]
  %v836 = vld [vmem:[%s2 + $0x70] sm:$0xf]
  %v837 = vld [vmem:[%s2 + $0x74] sm:$0xf]
  %v838 = vld [vmem:[%s2 + $0x78] sm:$0xf]
  %v839 = vld [vmem:[%s2 + $0x7c] sm:$0xf]
  %v840 = vld [vmem:[%s2 + $0x80] sm:$0xf]
  %v841 = vld [vmem:[%s2 + $0x84] sm:$0xf]
  %v842 = vld [vmem:[%s2 + $0x88] sm:$0xf]
  %v843 = vld [vmem:[%s2 + $0x8c] sm:$0xf]
  %v844 = vld [vmem:[%s2 + $0x90] sm:$0xf]
  %v845 = vld [vmem:[%s2 + $0x94] sm:$0xf]
  %v846 = vld [vmem:[%s2 + $0x98] sm:$0xf]
  %v847 = vld [vmem:[%s2 + $0x9c] sm:$0xf]
  %v848 = vld [vmem:[%s2 + $0xa0] sm:$0xf]
  %v849 = vld [vmem:[%s2 + $0xa4] sm:$0xf]
  %v850 = vld [vmem:[%s2 + $0xa8] sm:$0xf]
  %v851 = vld [vmem:[%s2 + $0xac] sm:$0xf]
  %v852 = vld [vmem:[%s2 + $0xb0] sm:$0xf]
  %v853 = vld [vmem:[%s2 + $0xb4] sm:$0xf]
  %v854 = vld [vmem:[%s2 + $0xb8] sm:$0xf]
  %v855 = vld [vmem:[%s2 + $0xbc] sm:$0xf]
  %v904 = vunpack.c.l.b16 %v808
  %v905 = vunpack.c.l.b16 %v809
  %v906 = vunpack.c.l.b16 %v810
  %v907 = vunpack.c.l.b16 %v811
  %v908 = vunpack.c.l.b16 %v812
  %v909 = vunpack.c.l.b16 %v813
  %v910 = vunpack.c.l.b16 %v814
  %v911 = vunpack.c.l.b16 %v815
  %v912 = vunpack.c.l.b16 %v816
  %v913 = vunpack.c.l.b16 %v817
  %v914 = vunpack.c.l.b16 %v818
  %v915 = vunpack.c.l.b16 %v819
  %v916 = vunpack.c.l.b16 %v820
  %v917 = vunpack.c.l.b16 %v821
  %v918 = vunpack.c.l.b16 %v822
  %v919 = vunpack.c.l.b16 %v823
  %v920 = vunpack.c.l.b16 %v824
  %v921 = vunpack.c.l.b16 %v825
  %v922 = vunpack.c.l.b16 %v826
  %v923 = vunpack.c.l.b16 %v827
  %v924 = vunpack.c.l.b16 %v828
  %v925 = vunpack.c.l.b16 %v829
  %v926 = vunpack.c.l.b16 %v830
  %v927 = vunpack.c.l.b16 %v831
  %v928 = vunpack.c.l.b16 %v832
  %v929 = vunpack.c.l.b16 %v833
  %v930 = vunpack.c.l.b16 %v834
  %v931 = vunpack.c.l.b16 %v835
  %v932 = vunpack.c.l.b16 %v836
  %v933 = vunpack.c.l.b16 %v837
  %v934 = vunpack.c.l.b16 %v838
  %v935 = vunpack.c.l.b16 %v839
  %v936 = vunpack.c.l.b16 %v840
  %v937 = vunpack.c.l.b16 %v841
  %v938 = vunpack.c.l.b16 %v842
  %v939 = vunpack.c.l.b16 %v843
  %v940 = vunpack.c.l.b16 %v844
  %v941 = vunpack.c.l.b16 %v845
  %v942 = vunpack.c.l.b16 %v846
  %v943 = vunpack.c.l.b16 %v847
  %v944 = vunpack.c.l.b16 %v848
  %v945 = vunpack.c.l.b16 %v849
  %v946 = vunpack.c.l.b16 %v850
  %v947 = vunpack.c.l.b16 %v851
  %v948 = vunpack.c.l.b16 %v852
  %v949 = vunpack.c.l.b16 %v853
  %v950 = vunpack.c.l.b16 %v854
  %v951 = vunpack.c.l.b16 %v855
  %v952 = vpack.c.b16 %v905, %v904
  %v953 = vpack.c.b16 %v907, %v906
  %v954 = vpack.c.b16 %v909, %v908
  %v955 = vpack.c.b16 %v911, %v910
  %v956 = vpack.c.b16 %v913, %v912
  %v957 = vpack.c.b16 %v915, %v914
  %v958 = vpack.c.b16 %v917, %v916
  %v959 = vpack.c.b16 %v919, %v918
  %v960 = vpack.c.b16 %v921, %v920
  %v961 = vpack.c.b16 %v923, %v922
  %v962 = vpack.c.b16 %v925, %v924
  %v963 = vpack.c.b16 %v927, %v926
  %v964 = vpack.c.b16 %v929, %v928
  %v965 = vpack.c.b16 %v931, %v930
  %v966 = vpack.c.b16 %v933, %v932
  %v967 = vpack.c.b16 %v935, %v934
  %v968 = vpack.c.b16 %v937, %v936
  %v969 = vpack.c.b16 %v939, %v938
  %v970 = vpack.c.b16 %v941, %v940
  %v971 = vpack.c.b16 %v943, %v942
  %v972 = vpack.c.b16 %v945, %v944
  %v973 = vpack.c.b16 %v947, %v946
  %v974 = vpack.c.b16 %v949, %v948
  %v975 = vpack.c.b16 %v951, %v950
  %1000 = vmatprep.subr.bf16.mxu0 0
  %1001 = vmatpush1.bf16.msra.mxu0 %v952
  %1002 = vmatprep.subr.bf16.mxu0 0
  %1003 = vmatpush1.bf16.msra.mxu0 %v953
  %1004 = vmatprep.subr.bf16.mxu0 0
  %1005 = vmatpush1.bf16.msra.mxu0 %v954
  %1006 = vmatprep.subr.bf16.mxu0 0
  %1007 = vmatpush1.bf16.msra.mxu0 %v955
  %1008 = vmatprep.subr.bf16.mxu0 0
  %1009 = vmatpush1.bf16.msra.mxu0 %v956
  %1010 = vmatprep.subr.bf16.mxu0 0
  %1011 = vmatpush1.bf16.msra.mxu0 %v957
  %1012 = vmatprep.subr.bf16.mxu0 0
  %1013 = vmatpush1.bf16.msra.mxu0 %v958
  %1014 = vmatprep.subr.bf16.mxu0 0
  %1015 = vmatpush1.bf16.msra.mxu0 %v959
  %1016 = vmatprep.subr.bf16.mxu0 0
  %1017 = vmatpush1.bf16.msra.mxu0 %v960
  %1018 = vmatprep.subr.bf16.mxu0 0
  %1019 = vmatpush1.bf16.msra.mxu0 %v961
  %1020 = vmatprep.subr.bf16.mxu0 0
  %1021 = vmatpush1.bf16.msra.mxu0 %v962
  %1022 = vmatprep.subr.bf16.mxu0 0
  %1023 = vmatpush1.bf16.msra.mxu0 %v963
  %1024 = vmatprep.subr.bf16.mxu0 0
  %1025 = vmatpush1.bf16.msra.mxu0 %v964
  %1026 = vmatprep.subr.bf16.mxu0 0
  %1027 = vmatpush1.bf16.msra.mxu0 %v965
  %1028 = vmatprep.subr.bf16.mxu0 0
  %1029 = vmatpush1.bf16.msra.mxu0 %v966
  %1030 = vmatprep.subr.bf16.mxu0 0
  %1031 = vmatpush1.bf16.msra.mxu0 %v967
  %1032 = vmatprep.mubr.bf16.mxu0 %v803
  %1033 = vmatmul.mubr.bf16.gmra.mrb[0].mxu0 %v802
  %v1034 = vpop.f32.mrb[0].mxu0
  %v1035 = vadd.f32 0.0, %v1034
  %v1036 = vpop.f32.mrb[0].mxu0
  %v1037 = vpop.f32.mrb[0].mxu0
  %v1038 = vadd.f32 0.0, %v1037
  %v1039 = vpop.f32.mrb[0].mxu0
  %1040 = vmatprep.mubr.bf16.mxu0 %v806
  %1041 = vmatmul.mubr.bf16.gmra.mrb[0].mxu0 %v805
  %v1042 = vpop.f32.mrb[0].mxu0
  %v1043 = vadd.f32 0.0, %v1042
  %v1044 = vpop.f32.mrb[0].mxu0
  %v1045 = vpop.f32.mrb[0].mxu0
  %v1046 = vadd.f32 0.0, %v1045
  %v1047 = vpop.f32.mrb[0].mxu0
  %1048 = vdwg.mxu0
  %1049 = vmatprep.subr.bf16.mxu0 0
  %1050 = vmatpush1.bf16.msra.mxu0 %v968
  %1051 = vmatprep.subr.bf16.mxu0 0
  %1052 = vmatpush1.bf16.msra.mxu0 %v969
  %1053 = vmatprep.subr.bf16.mxu0 0
  %1054 = vmatpush1.bf16.msra.mxu0 %v970
  %1055 = vmatprep.subr.bf16.mxu0 0
  %1056 = vmatpush1.bf16.msra.mxu0 %v971
  %1057 = vmatprep.subr.bf16.mxu0 0
  %1058 = vmatpush1.bf16.msra.mxu0 %v972
  %1059 = vmatprep.subr.bf16.mxu0 0
  %1060 = vmatpush1.bf16.msra.mxu0 %v973
  %1061 = vmatprep.subr.bf16.mxu0 0
  %1062 = vmatpush1.bf16.msra.mxu0 %v974
  %1063 = vmatprep.subr.bf16.mxu0 0
  %1064 = vmatpush1.bf16.msra.mxu0 %v975
  %1065 = vmatprep.subr.bf16.mxu0 0
  %1066 = vmatpush1.bf16.msra.mxu0 0
  %1067 = vmatprep.subr.bf16.mxu0 0
  %1068 = vmatpush1.bf16.msra.mxu0 0
  %1069 = vmatprep.subr.bf16.mxu0 0
  %1070 = vmatpush1.bf16.msra.mxu0 0
  %1071 = vmatprep.subr.bf16.mxu0 0
  %1072 = vmatpush1.bf16.msra.mxu0 0
  %1073 = vmatprep.subr.bf16.mxu0 0
  %1074 = vmatpush1.bf16.msra.mxu0 0
  %1075 = vmatprep.subr.bf16.mxu0 0
  %1076 = vmatpush1.bf16.msra.mxu0 0
  %1077 = vmatprep.subr.bf16.mxu0 0
  %1078 = vmatpush1.bf16.msra.mxu0 0
  %1079 = vmatprep.subr.bf16.mxu0 0
  %1080 = vmatpush1.bf16.msra.mxu0 0
  %1081 = vmatprep.mubr.bf16.mxu0 0
  %1082 = vmatmul.mubr.bf16.gmra.mrb[0].mxu0 %v804
  %v1083 = vpop.f32.mrb[0].mxu0
  %v1084 = vadd.f32 %v1035, %v1083
  %v1085 = vpop.f32.mrb[0].mxu0
  %v1086 = vpop.f32.mrb[0].mxu0
  %v1087 = vadd.f32 %v1038, %v1086
  %v1088 = vpop.f32.mrb[0].mxu0
  %1089 = vmatprep.mubr.bf16.mxu0 0
  %1090 = vmatmul.mubr.bf16.gmra.mrb[0].mxu0 %v807
  %v1091 = vpop.f32.mrb[0].mxu0
  %v1092 = vadd.f32 %v1043, %v1091
  %v1093 = vpop.f32.mrb[0].mxu0
  %v1094 = vpop.f32.mrb[0].mxu0
  %v1095 = vadd.f32 %v1046, %v1094
  %v1096 = vpop.f32.mrb[0].mxu0
  %1097 = vdwg.mxu0
  %v1098 = vld [vmem:[%s5] sm:$0x1]
  %v1099 = vld [vmem:[%s6] sm:$0x1]
  %v1100 = vadd.f32 %v1084, %v1087
  %v1101 = vadd.f32 %v1100, %v1092
  %v1102 = vadd.f32 %v1101, %v1095
  %v1103 = vrot.slane %v1102, 4
  %v1104 = vadd.f32 %v1102, %v1103
  %v1105 = vrot.slane %v1104, 2
  %v1106 = vadd.f32 %v1104, %v1105
  %v1107 = vrot.slane %v1106, 1
  %v1108 = vadd.f32 %v1106, %v1107
  %1109 = vmatprep.subr.mxu0 0.0
  %1110 = vmatpush1.msra.mxu0 %v33
  %1111 = vmatprep.subr.mxu0 0.0
  %1112 = vmatpush1.msra.mxu0 %v34
  %1113 = vmatprep.subr.mxu0 0.0
  %1114 = vmatpush1.msra.mxu0 %v35
  %1115 = vmatprep.subr.mxu0 0.0
  %1116 = vmatpush1.msra.mxu0 %v36
  %1117 = vmatprep.subr.mxu0 0.0
  %1118 = vmatpush1.msra.mxu0 %v37
  %1119 = vmatprep.subr.mxu0 0.0
  %1120 = vmatpush1.msra.mxu0 %v38
  %1121 = vmatprep.subr.mxu0 0.0
  %1122 = vmatpush1.msra.mxu0 %v39
  %1123 = vmatprep.subr.mxu0 0.0
  %1124 = vmatpush1.msra.mxu0 %v40
  %1125 = vmatprep.subr.mxu0 0.0
  %1126 = vmatpush1.msra.mxu0 %v41
  %1127 = vmatprep.subr.mxu0 0.0
  %1128 = vmatpush1.msra.mxu0 %v42
  %1129 = vmatprep.subr.mxu0 0.0
  %1130 = vmatpush1.msra.mxu0 %v43
  %1131 = vmatprep.subr.mxu0 0.0
  %1132 = vmatpush1.msra.mxu0 %v44
  %1133 = vmatprep.subr.mxu0 0.0
  %1134 = vmatpush1.msra.mxu0 %v45
  %1135 = vmatprep.subr.mxu0 0.0
  %1136 = vmatpush1.msra.mxu0 %v46
  %1137 = vmatprep.subr.mxu0 0.0
  %1138 = vmatpush1.msra.mxu0 %v47
  %1139 = vmatprep.subr.mxu0 0.0
  %1140 = vmatpush1.msra.mxu0 %v48
  %1141 = vmatprep.subr.mxu0 0.0
  %1142 = vmatpush1.msra.mxu0 0.0
  %1143 = vmatprep.subr.mxu0 0.0
  %1144 = vmatpush1.msra.mxu0 0.0
  %1145 = vmatprep.subr.mxu0 0.0
  %1146 = vmatpush1.msra.mxu0 0.0
  %1147 = vmatprep.subr.mxu0 0.0
  %1148 = vmatpush1.msra.mxu0 0.0
  %1149 = vmatprep.subr.mxu0 0.0
  %1150 = vmatpush1.msra.mxu0 0.0
  %1151 = vmatprep.subr.mxu0 0.0
  %1152 = vmatpush1.msra.mxu0 0.0
  %1153 = vmatprep.subr.mxu0 0.0
  %1154 = vmatpush1.msra.mxu0 0.0
  %1155 = vmatprep.subr.mxu0 0.0
  %1156 = vmatpush1.msra.mxu0 0.0
  %1157 = vmatprep.subr.mxu0 0.0
  %1158 = vmatpush1.msra.mxu0 0.0
  %1159 = vmatprep.subr.mxu0 0.0
  %1160 = vmatpush1.msra.mxu0 0.0
  %1161 = vmatprep.subr.mxu0 0.0
  %1162 = vmatpush1.msra.mxu0 0.0
  %1163 = vmatprep.subr.mxu0 0.0
  %1164 = vmatpush1.msra.mxu0 0.0
  %1165 = vmatprep.subr.mxu0 0.0
  %1166 = vmatpush1.msra.mxu0 0.0
  %1167 = vmatprep.subr.mxu0 0.0
  %1168 = vmatpush1.msra.mxu0 0.0
  %1169 = vmatprep.subr.mxu0 0.0
  %1170 = vmatpush1.msra.mxu0 0.0
  %1171 = vmatprep.subr.mxu0 0.0
  %1172 = vmatpush1.msra.mxu0 0.0
  %1173 = vmatprep.mubr.f32.mxu0 0.0
  %1174 = vmatmul.mubr.f32.gmra.mrb[0].mxu0 %v1108
  %v1175 = vpop.f32.mrb[0].mxu0
  %v1176 = vadd.f32 0.0, %v1175
  %v1177 = vpop.f32.mrb[0].mxu0
  %1178 = vdwg.mxu0
  %v1179 = vmul.f32 %v1084, %v1084
  %v1180 = vmul.f32 %v1087, %v1087
  %v1181 = vmul.f32 %v1092, %v1092
  %v1182 = vmul.f32 %v1095, %v1095
  %v1183 = vadd.f32 %v1179, %v1180
  %v1184 = vadd.f32 %v1183, %v1181
  %v1185 = vadd.f32 %v1184, %v1182
  %v1186 = vrot.slane %v1185, 4
  %v1187 = vadd.f32 %v1185, %v1186
  %v1188 = vrot.slane %v1187, 2
  %v1189 = vadd.f32 %v1187, %v1188
  %v1190 = vrot.slane %v1189, 1
  %v1191 = vadd.f32 %v1189, %v1190
  %1192 = vmatprep.subr.mxu0 0.0
  %1193 = vmatpush1.msra.mxu0 %v33
  %1194 = vmatprep.subr.mxu0 0.0
  %1195 = vmatpush1.msra.mxu0 %v34
  %1196 = vmatprep.subr.mxu0 0.0
  %1197 = vmatpush1.msra.mxu0 %v35
  %1198 = vmatprep.subr.mxu0 0.0
  %1199 = vmatpush1.msra.mxu0 %v36
  %1200 = vmatprep.subr.mxu0 0.0
  %1201 = vmatpush1.msra.mxu0 %v37
  %1202 = vmatprep.subr.mxu0 0.0
  %1203 = vmatpush1.msra.mxu0 %v38
  %1204 = vmatprep.subr.mxu0 0.0
  %1205 = vmatpush1.msra.mxu0 %v39
  %1206 = vmatprep.subr.mxu0 0.0
  %1207 = vmatpush1.msra.mxu0 %v40
  %1208 = vmatprep.subr.mxu0 0.0
  %1209 = vmatpush1.msra.mxu0 %v41
  %1210 = vmatprep.subr.mxu0 0.0
  %1211 = vmatpush1.msra.mxu0 %v42
  %1212 = vmatprep.subr.mxu0 0.0
  %1213 = vmatpush1.msra.mxu0 %v43
  %1214 = vmatprep.subr.mxu0 0.0
  %1215 = vmatpush1.msra.mxu0 %v44
  %1216 = vmatprep.subr.mxu0 0.0
  %1217 = vmatpush1.msra.mxu0 %v45
  %1218 = vmatprep.subr.mxu0 0.0
  %1219 = vmatpush1.msra.mxu0 %v46
  %1220 = vmatprep.subr.mxu0 0.0
  %1221 = vmatpush1.msra.mxu0 %v47
  %1222 = vmatprep.subr.mxu0 0.0
  %1223 = vmatpush1.msra.mxu0 %v48
  %1224 = vmatprep.subr.mxu0 0.0
  %1225 = vmatpush1.msra.mxu0 0.0
  %1226 = vmatprep.subr.mxu0 0.0
  %1227 = vmatpush1.msra.mxu0 0.0
  %1228 = vmatprep.subr.mxu0 0.0
  %1229 = vmatpush1.msra.mxu0 0.0
  %1230 = vmatprep.subr.mxu0 0.0
  %1231 = vmatpush1.msra.mxu0 0.0
  %1232 = vmatprep.subr.mxu0 0.0
  %1233 = vmatpush1.msra.mxu0 0.0
  %1234 = vmatprep.subr.mxu0 0.0
  %1235 = vmatpush1.msra.mxu0 0.0
  %1236 = vmatprep.subr.mxu0 0.0
  %1237 = vmatpush1.msra.mxu0 0.0
  %1238 = vmatprep.subr.mxu0 0.0
  %1239 = vmatpush1.msra.mxu0 0.0
  %1240 = vmatprep.subr.mxu0 0.0
  %1241 = vmatpush1.msra.mxu0 0.0
  %1242 = vmatprep.subr.mxu0 0.0
  %1243 = vmatpush1.msra.mxu0 0.0
  %1244 = vmatprep.subr.mxu0 0.0
  %1245 = vmatpush1.msra.mxu0 0.0
  %1246 = vmatprep.subr.mxu0 0.0
  %1247 = vmatpush1.msra.mxu0 0.0
  %1248 = vmatprep.subr.mxu0 0.0
  %1249 = vmatpush1.msra.mxu0 0.0
  %1250 = vmatprep.subr.mxu0 0.0
  %1251 = vmatpush1.msra.mxu0 0.0
  %1252 = vmatprep.subr.mxu0 0.0
  %1253 = vmatpush1.msra.mxu0 0.0
  %1254 = vmatprep.subr.mxu0 0.0
  %1255 = vmatpush1.msra.mxu0 0.0
  %1256 = vmatprep.mubr.f32.mxu0 0.0
  %1257 = vmatmul.mubr.f32.gmra.mrb[0].mxu0 %v1191
  %v1258 = vpop.f32.mrb[0].mxu0
  %v1259 = vadd.f32 0.0, %v1258
  %v1260 = vpop.f32.mrb[0].mxu0
  %1261 = vdwg.mxu0
  %v1262 = vmul.f32 %v1176, 0.001953125
  %v1263 = vmul.f32 %v1259, 0.001953125
  %v1264 = vmul.f32 %v1262, %v1262
  %v1265 = vsub.f32 %v1263, %v1264
  %v1266 = vmax.f32 %v1265, 0.0
  %v1267 = vadd.f32 %v1266, 1e-05
  %v1268 = vrsqrt.pop %v1267
  %v1269 = vmul.f32 %v1098, %v1268
  %v1270 = vmul.f32 %v1262, %v1269
  %v1271 = vsub.f32 %v1099, %v1270
  %v1273 = vsel %vm585, %v1269, 0
  %1275 = vmatprep.subr.mxu0 0.0
  %1276 = vmatpush1.msra.mxu0 %v49
  %1277 = vmatprep.subr.mxu0 0.0
  %1278 = vmatpush1.msra.mxu0 0.0
  %1279 = vmatprep.subr.mxu0 0.0
  %1280 = vmatpush1.msra.mxu0 0.0
  %1281 = vmatprep.subr.mxu0 0.0
  %1282 = vmatpush1.msra.mxu0 0.0
  %1283 = vmatprep.subr.mxu0 0.0
  %1284 = vmatpush1.msra.mxu0 0.0
  %1285 = vmatprep.subr.mxu0 0.0
  %1286 = vmatpush1.msra.mxu0 0.0
  %1287 = vmatprep.subr.mxu0 0.0
  %1288 = vmatpush1.msra.mxu0 0.0
  %1289 = vmatprep.subr.mxu0 0.0
  %1290 = vmatpush1.msra.mxu0 0.0
  %1291 = vmatprep.subr.mxu0 0.0
  %1292 = vmatpush1.msra.mxu0 0.0
  %1293 = vmatprep.subr.mxu0 0.0
  %1294 = vmatpush1.msra.mxu0 0.0
  %1295 = vmatprep.subr.mxu0 0.0
  %1296 = vmatpush1.msra.mxu0 0.0
  %1297 = vmatprep.subr.mxu0 0.0
  %1298 = vmatpush1.msra.mxu0 0.0
  %1299 = vmatprep.subr.mxu0 0.0
  %1300 = vmatpush1.msra.mxu0 0.0
  %1301 = vmatprep.subr.mxu0 0.0
  %1302 = vmatpush1.msra.mxu0 0.0
  %1303 = vmatprep.subr.mxu0 0.0
  %1304 = vmatpush1.msra.mxu0 0.0
  %1305 = vmatprep.subr.mxu0 0.0
  %1306 = vmatpush1.msra.mxu0 0.0
  %1307 = vmatprep.subr.mxu0 0.0
  %1308 = vmatpush1.msra.mxu0 0.0
  %1309 = vmatprep.subr.mxu0 0.0
  %1310 = vmatpush1.msra.mxu0 0.0
  %1311 = vmatprep.subr.mxu0 0.0
  %1312 = vmatpush1.msra.mxu0 0.0
  %1313 = vmatprep.subr.mxu0 0.0
  %1314 = vmatpush1.msra.mxu0 0.0
  %1315 = vmatprep.subr.mxu0 0.0
  %1316 = vmatpush1.msra.mxu0 0.0
  %1317 = vmatprep.subr.mxu0 0.0
  %1318 = vmatpush1.msra.mxu0 0.0
  %1319 = vmatprep.subr.mxu0 0.0
  %1320 = vmatpush1.msra.mxu0 0.0
  %1321 = vmatprep.subr.mxu0 0.0
  %1322 = vmatpush1.msra.mxu0 0.0
  %1323 = vmatprep.subr.mxu0 0.0
  %1324 = vmatpush1.msra.mxu0 0.0
  %1325 = vmatprep.subr.mxu0 0.0
  %1326 = vmatpush1.msra.mxu0 0.0
  %1327 = vmatprep.subr.mxu0 0.0
  %1328 = vmatpush1.msra.mxu0 0.0
  %1329 = vmatprep.subr.mxu0 0.0
  %1330 = vmatpush1.msra.mxu0 0.0
  %1331 = vmatprep.subr.mxu0 0.0
  %1332 = vmatpush1.msra.mxu0 0.0
  %1333 = vmatprep.subr.mxu0 0.0
  %1334 = vmatpush1.msra.mxu0 0.0
  %1335 = vmatprep.subr.mxu0 0.0
  %1336 = vmatpush1.msra.mxu0 0.0
  %1337 = vmatprep.subr.mxu0 0.0
  %1338 = vmatpush1.msra.mxu0 0.0
  %1339 = vmatprep.mubr.f32.mxu0 0.0
  %1340 = vmatmul.mubr.f32.gmra.mrb[0].mxu0 %v1273
  %v1341 = vpop.f32.mrb[0].mxu0
  %v1342 = vadd.f32 0.0, %v1341
  %v1343 = vpop.f32.mrb[0].mxu0
  %1344 = vdwg.mxu0
  %v1346 = vsel %vm585, %v1271, 0
  %1348 = vmatprep.subr.mxu0 0.0
  %1349 = vmatpush1.msra.mxu0 %v49
  %1350 = vmatprep.subr.mxu0 0.0
  %1351 = vmatpush1.msra.mxu0 0.0
  %1352 = vmatprep.subr.mxu0 0.0
  %1353 = vmatpush1.msra.mxu0 0.0
  %1354 = vmatprep.subr.mxu0 0.0
  %1355 = vmatpush1.msra.mxu0 0.0
  %1356 = vmatprep.subr.mxu0 0.0
  %1357 = vmatpush1.msra.mxu0 0.0
  %1358 = vmatprep.subr.mxu0 0.0
  %1359 = vmatpush1.msra.mxu0 0.0
  %1360 = vmatprep.subr.mxu0 0.0
  %1361 = vmatpush1.msra.mxu0 0.0
  %1362 = vmatprep.subr.mxu0 0.0
  %1363 = vmatpush1.msra.mxu0 0.0
  %1364 = vmatprep.subr.mxu0 0.0
  %1365 = vmatpush1.msra.mxu0 0.0
  %1366 = vmatprep.subr.mxu0 0.0
  %1367 = vmatpush1.msra.mxu0 0.0
  %1368 = vmatprep.subr.mxu0 0.0
  %1369 = vmatpush1.msra.mxu0 0.0
  %1370 = vmatprep.subr.mxu0 0.0
  %1371 = vmatpush1.msra.mxu0 0.0
  %1372 = vmatprep.subr.mxu0 0.0
  %1373 = vmatpush1.msra.mxu0 0.0
  %1374 = vmatprep.subr.mxu0 0.0
  %1375 = vmatpush1.msra.mxu0 0.0
  %1376 = vmatprep.subr.mxu0 0.0
  %1377 = vmatpush1.msra.mxu0 0.0
  %1378 = vmatprep.subr.mxu0 0.0
  %1379 = vmatpush1.msra.mxu0 0.0
  %1380 = vmatprep.subr.mxu0 0.0
  %1381 = vmatpush1.msra.mxu0 0.0
  %1382 = vmatprep.subr.mxu0 0.0
  %1383 = vmatpush1.msra.mxu0 0.0
  %1384 = vmatprep.subr.mxu0 0.0
  %1385 = vmatpush1.msra.mxu0 0.0
  %1386 = vmatprep.subr.mxu0 0.0
  %1387 = vmatpush1.msra.mxu0 0.0
  %1388 = vmatprep.subr.mxu0 0.0
  %1389 = vmatpush1.msra.mxu0 0.0
  %1390 = vmatprep.subr.mxu0 0.0
  %1391 = vmatpush1.msra.mxu0 0.0
  %1392 = vmatprep.subr.mxu0 0.0
  %1393 = vmatpush1.msra.mxu0 0.0
  %1394 = vmatprep.subr.mxu0 0.0
  %1395 = vmatpush1.msra.mxu0 0.0
  %1396 = vmatprep.subr.mxu0 0.0
  %1397 = vmatpush1.msra.mxu0 0.0
  %1398 = vmatprep.subr.mxu0 0.0
  %1399 = vmatpush1.msra.mxu0 0.0
  %1400 = vmatprep.subr.mxu0 0.0
  %1401 = vmatpush1.msra.mxu0 0.0
  %1402 = vmatprep.subr.mxu0 0.0
  %1403 = vmatpush1.msra.mxu0 0.0
  %1404 = vmatprep.subr.mxu0 0.0
  %1405 = vmatpush1.msra.mxu0 0.0
  %1406 = vmatprep.subr.mxu0 0.0
  %1407 = vmatpush1.msra.mxu0 0.0
  %1408 = vmatprep.subr.mxu0 0.0
  %1409 = vmatpush1.msra.mxu0 0.0
  %1410 = vmatprep.subr.mxu0 0.0
  %1411 = vmatpush1.msra.mxu0 0.0
  %1412 = vmatprep.mubr.f32.mxu0 0.0
  %1413 = vmatmul.mubr.f32.gmra.mrb[0].mxu0 %v1346
  %v1414 = vpop.f32.mrb[0].mxu0
  %v1415 = vadd.f32 0.0, %v1414
  %v1416 = vpop.f32.mrb[0].mxu0
  %1417 = vdwg.mxu0
  %v1418 = vlaneseq
  %v1419 = vshrl.u32 %v1418, 7
  %v1420 = vsub.s32 0, %v1419
  %v1421 = vrot.slane %v1342, %v1420
  %v1422 = vmul.f32 %v1084, %v1421
  %v1423 = vmul.f32 %v1087, %v1421
  %v1424 = vmul.f32 %v1092, %v1421
  %v1425 = vmul.f32 %v1095, %v1421
  %v1426 = vlaneseq
  %v1427 = vshrl.u32 %v1426, 7
  %v1428 = vsub.s32 0, %v1427
  %v1429 = vrot.slane %v1415, %v1428
  %v1430 = vadd.f32 %v1422, %v1429
  %v1431 = vadd.f32 %v1423, %v1429
  %v1432 = vadd.f32 %v1424, %v1429
  %v1433 = vadd.f32 %v1425, %v1429
  %v1434 = vld [vmem:[%s0] sm:$0xff]
  %v1435 = vld [vmem:[%s0 + $0x8] sm:$0xff]
  %v1436 = vld [vmem:[%s0 + $0x10] sm:$0xff]
  %v1437 = vld [vmem:[%s0 + $0x18] sm:$0xff]
  %v1438 = vadd.f32 %v1430, %v1434
  %v1439 = vadd.f32 %v1431, %v1435
  %v1440 = vadd.f32 %v1432, %v1436
  %v1441 = vadd.f32 %v1433, %v1437
  %v1442 = vmax.f32 %v1438, 0.0
  %v1443 = vmax.f32 %v1439, 0.0
  %v1444 = vmax.f32 %v1440, 0.0
  %v1445 = vmax.f32 %v1441, 0.0
  %1446 = vst [vmem:[%s9] sm:$0xff] %v1442
  %1447 = vst [vmem:[%s9 + $0x8] sm:$0xff] %v1443
  %1448 = vst [vmem:[%s9 + $0x10] sm:$0xff] %v1444
  %1449 = vst [vmem:[%s9 + $0x18] sm:$0xff] %v1445
  // Predicated region
  $region38: #{basic_block_forward.1} parent=0 // pred_check
    _
  $region39: #{basic_block_forward.1} parent=0 // pred_check_branch
    %1451 = sbr.rel (0) target = $region41
  $region40: #{basic_block_forward.1} parent=0 // pred_region
    _
  $region41: #{basic_block_forward.1} parent=0 // pred_fallthru
    _
  // Predicated region
  $region42: #{basic_block_forward.1} parent=0 // pred_check
    _
  $region43: #{basic_block_forward.1} parent=0 // pred_check_branch
    %1453 = sbr.rel (0) target = $region45
  $region44: #{basic_block_forward.1} parent=0 // pred_region
    _
  $region45: #{basic_block_forward.1} parent=0 // pred_fallthru
    _

</llo_original>
